<compile_context>
chip_gen: v6e
topology: v6e:2x2x1
jax: 0.10.0
libtpu: 0.0.40
codegen_flags: <defaults>
</compile_context>

<pallas_src>
import math

import jax
import jax.numpy as jnp
from jax.experimental import pallas as pl
from jax.experimental.pallas import tpu as pltpu

# ----------------------------- configuration --------------------------------
B = 2                # batch
N = 128              # points per cloud
IN_DIM = 3           # xyz
NCLASS = 4           # n_class
ZDIM = 8             # zdim
HID = 32             # encoder hidden width
FEAT = ZDIM + 3 + 3  # per-class context features [z | mean | exp(logvar)]
CTX = NCLASS * FEAT  # flattened point-CNF conditioning dim (56)
CTX_HID = 32         # point-CNF context-net hidden width

PT_LANES = 16        # packed point slab width:  [inp(3) | flag(4) | ref(3) | pad]
ROW_LANES = 16       # packed row slab width:    [eps(8) | valid(1) | pad]
PARAM_LANES = 32     # packed params slab width
OUT_LANES = 128      # lane-dense packed output row width
OUT_SUB = 8          # sublane rows per output block (full (8,128) vreg tile)

LOG2PI = math.log(2.0 * math.pi)
ENT_CONST = 0.5 * float(ZDIM) * (1.0 + math.log(math.pi * 2.0))
PRIOR_W, RECON_W, ENT_W = 1.0, 1.0, 1.0

# ----------------------------- params slab layout ----------------------------
# (name, reserved rows (multiple of 8), used rows, used cols)
_PARAM_LAYOUT = (
    ('w1',       8, IN_DIM + NCLASS, HID),
    ('b1',       8, 1,               HID),
    ('w2',      32, HID,             HID),
    ('b2',       8, 1,               HID),
    ('w_heads', 32, HID,             2 * ZDIM),
    ('b_heads',  8, 1,               2 * ZDIM),
    ('wa',       8, ZDIM,            6),
    ('ba',       8, 1,               6),
    ('lat_s',    8, NCLASS,          ZDIM),
    ('lat_t',    8, NCLASS,          ZDIM),
    ('wc1',     56, CTX,             CTX_HID),
    ('bc1',      8, 1,               CTX_HID),
    ('wc2',     32, CTX_HID,         6),
    ('bc2',      8, 1,               6),
)

PARAM_SLOTS = {}
_off = 0
for _nm, _res, _r, _c in _PARAM_LAYOUT:
    PARAM_SLOTS[_nm] = (_off, _r, _c)
    _off += _res
PROWS = _off  # 232, multiple of 8


def pack_params(params):
    """Pack all weights/biases into a single (PROWS, PARAM_LANES) f32 slab."""
    blocks = []
    for nm, res, rows, cols in _PARAM_LAYOUT:
        x = params[nm].astype(jnp.float32)
        blocks.append(jnp.pad(x, ((0, res - rows), (0, PARAM_LANES - cols))))
    return jnp.concatenate(blocks, axis=0)


# ----------------------------- fused Pallas kernel ---------------------------
def pointflow_kernel(pts_ref, row_ref, p_ref, out_ref):
    """One grid step == one batch element b.

    pts_ref : (N, PT_LANES)        [inp xyz | flag | ref xyz | pad] for batch b
    row_ref : (1, NCLASS, ROW_LANES) [eps | valid | pad] for batch b
    p_ref   : (PROWS, PARAM_LANES) packed parameters (shared across grid)
    out_ref : (1, OUT_SUB, OUT_LANES) packed stats, row 0 lanes:
        0: sum gaussian_log_likelihood(ref, mean_pp, logvar_pp) over points/dims
        1: log_py  = sum_n standard_normal_logprob(point_cnf(ref))
        2: delta_log_py summed over points
        3: sum_k [ log_pw_k - delta_log_pw_k * valid[b,k] ]   (latent-flow rows)
        4: sum_k gaussian_entropy(z_sigma[b,k])
    """
    f32 = jnp.float32

    def P(name):
        off, rows, cols = PARAM_SLOTS[name]
        return p_ref[off:off + rows, 0:cols]

    pts = pts_ref[...]                                   # (N, 16)
    xf = pts[:, 0:IN_DIM + NCLASS]                       # (N, 7)  [xyz | flag]
    flag = pts[:, IN_DIM:IN_DIM + NCLASS]                # (N, 4)
    refp = pts[:, IN_DIM + NCLASS:2 * IN_DIM + NCLASS]   # (N, 3)

    rowd = row_ref[0]                                    # (NCLASS, 16)
    eps = rowd[:, 0:ZDIM]                                # (NCLASS, ZDIM)
    valid = rowd[:, ZDIM:ZDIM + 1]                       # (NCLASS, 1)

    # ---- encoder per-point MLP (f32; tiny-K matmuls are latency bound) ----
    h = jnp.maximum(jnp.dot(xf, P('w1'), preferred_element_type=f32) + P('b1'), 0.0)
    h = jnp.maximum(jnp.dot(h, P('w2'), preferred_element_type=f32) + P('b2'), 0.0)  # (N, HID) >= 0

    # ---- per-class masked max-pool (no (KB,BN,HID) broadcast intermediate) ----
    # TODO(synk): empty classes pool to 0 (ReLU floor) instead of a -inf sentinel.
    pooled = jnp.concatenate(
        [jnp.max(h * flag[:, k:k + 1], axis=0, keepdims=True) for k in range(NCLASS)],
        axis=0)                                          # (NCLASS, HID)

    # ---- fused z heads [mu | sigma] + reparameterize ----
    heads = jnp.dot(pooled, P('w_heads'), preferred_element_type=f32) + P('b_heads')
    z_mu = heads[:, 0:ZDIM]
    z_sigma = heads[:, ZDIM:2 * ZDIM]
    z = z_mu + jnp.exp(0.5 * z_sigma) * eps              # (NCLASS, ZDIM)

    # ---- part_aligner: fused [mean | logvar] head ----
    mean_lv = jnp.dot(z, P('wa'), preferred_element_type=f32) + P('ba')   # (NCLASS, 6)
    mean_kc = mean_lv[:, 0:3]
    logvar_kc = mean_lv[:, 3:6]

    # ---- gaussian entropy, summed over classes (ungated, as in the reference) ----
    ent = jnp.sum(0.5 * jnp.sum(z_sigma, axis=1, keepdims=True) + ENT_CONST,
                  axis=0, keepdims=True)                 # (1, 1)

    # ---- latent flow (affine stand-in for FFJORD latent_cnf), per class ----
    lat_s = P('lat_s')
    lat_t = P('lat_t')
    w_lat = z * jnp.exp(lat_s) + lat_t
    log_pw = jnp.sum(-0.5 * LOG2PI - 0.5 * w_lat * w_lat, axis=1, keepdims=True)   # (NCLASS, 1)
    delta_log_pw = -jnp.sum(lat_s, axis=1, keepdims=True)                          # (NCLASS, 1)
    log_pz = jnp.sum(log_pw - delta_log_pw * valid, axis=0, keepdims=True)         # (1, 1)

    # ---- point-CNF context net (affine stand-in for FFJORD point_cnf) ----
    z_new = jnp.concatenate([z, mean_kc, jnp.exp(logvar_kc)], axis=-1)             # (NCLASS, FEAT)
    z_flat = jnp.concatenate([z_new[k:k + 1, :] for k in range(NCLASS)], axis=-1)  # (1, CTX)
    hc = jnp.tanh(jnp.dot(z_flat, P('wc1'), preferred_element_type=f32) + P('bc1'))  # (1, CTX_HID)
    st = jnp.dot(hc, P('wc2'), preferred_element_type=f32) + P('bc2')              # (1, 6): [s | t]
    s_vec = st[:, 0:3]
    t_vec = st[:, 3:6]

    # ---- gather_all ([mean|logvar] per point) + gaussian log-likelihood ----
    mlv_pp = jnp.dot(flag, mean_lv, preferred_element_type=f32)                    # (N, 6)
    diff = refp - mlv_pp[:, 0:3]
    lv_pp = mlv_pp[:, 3:6]
    gll = -0.5 * (LOG2PI + lv_pp + diff * diff * jnp.exp(-lv_pp))                  # (N, 3)
    gll_sum = jnp.sum(jnp.sum(gll, axis=0, keepdims=True), axis=1, keepdims=True)  # (1, 1)

    # ---- point_cnf forward (affine): y = ref * exp(s_b) + t_b (broadcast) ----
    y = refp * jnp.exp(s_vec) + t_vec                                              # (N, 3)
    logpy = -0.5 * LOG2PI - 0.5 * y * y
    logpy_sum = jnp.sum(jnp.sum(logpy, axis=0, keepdims=True), axis=1, keepdims=True)
    dlogpy_sum = -float(N) * jnp.sum(s_vec, axis=1, keepdims=True)                 # (1, 1)

    # ---- pack lane-dense output and store once ----
    row = jnp.concatenate(
        [gll_sum, logpy_sum, dlogpy_sum, log_pz, ent,
         jnp.zeros((1, OUT_LANES - 5), f32)], axis=-1)                             # (1, 128)
    out_ref[0] = jnp.concatenate(
        [row, jnp.zeros((OUT_SUB - 1, OUT_LANES), f32)], axis=0)                   # (8, 128)


# ----------------------------- parameters --------------------------------
def init_params(key):
    ks = jax.random.split(key, 8)

    def w(k, shape, scale=0.1):
        return scale * jax.random.normal(k, shape, jnp.float32)

    return {
        # encoder (first layer acts on packed [xyz | seg one-hot])
        'w1': w(ks[0], (IN_DIM + NCLASS, HID)),
        'b1': jnp.zeros((1, HID), jnp.float32),
        'w2': w(ks[1], (HID, HID)),
        'b2': jnp.zeros((1, HID), jnp.float32),
        'w_heads': w(ks[2], (HID, 2 * ZDIM)),          # [mu | sigma]
        'b_heads': jnp.zeros((1, 2 * ZDIM), jnp.float32),
        # part_aligner (fused [mean | logvar] head)
        'wa': w(ks[3], (ZDIM, 6)),
        'ba': jnp.zeros((1, 6), jnp.float32),
        # latent_cnf: one affine flow per class
        'lat_s': w(ks[4], (NCLASS, ZDIM)),
        'lat_t': w(ks[5], (NCLASS, ZDIM)),
        # point_cnf context net
        'wc1': w(ks[6], (CTX, CTX_HID)),
        'bc1': jnp.zeros((1, CTX_HID), jnp.float32),
        'wc2': w(ks[7], (CTX_HID, 6)),
        'bc2': jnp.zeros((1, 6), jnp.float32),
    }


# ----------------------------- forward (training) --------------------------------
def pointflow_forward(params, pcds, key):
    inp = pcds['input']                 # (B, N, 3)
    ref = pcds['ref']                   # (B, N, 3)
    seg_flag = pcds['attn_map']         # (B, N, NCLASS) == one_hot(ref_seg_mask)
    valid_id = pcds['present']          # (B, NCLASS)

    # ---- pack the 3 kernel operands (cheap XLA layout ops) ----
    inp_flat = inp.reshape(B * N, IN_DIM)
    ref_flat = ref.reshape(B * N, IN_DIM)
    flag_flat = seg_flag.reshape(B * N, NCLASS)
    pts = jnp.concatenate(
        [inp_flat, flag_flat, ref_flat,
         jnp.zeros((B * N, PT_LANES - (2 * IN_DIM + NCLASS)), jnp.float32)],
        axis=-1)                                                         # (BN, 16)

    eps = jax.random.normal(key, (B, NCLASS, ZDIM), jnp.float32)
    rowdat = jnp.concatenate(
        [eps, valid_id[:, :, None].astype(jnp.float32),
         jnp.zeros((B, NCLASS, ROW_LANES - ZDIM - 1), jnp.float32)],
        axis=-1)                                                         # (B, NCLASS, 16)

    pslab = pack_params(params)                                          # (PROWS, 32)

    flops = 2 * B * N * ((IN_DIM + NCLASS) * HID + HID * HID + NCLASS * 6) \
        + 2 * B * (NCLASS * HID * 2 * ZDIM + NCLASS * ZDIM * 6 + CTX * CTX_HID + CTX_HID * 6)
    bytes_accessed = 4 * (pts.size + rowdat.size + pslab.size + B * OUT_SUB * OUT_LANES)
    transcendentals = B * (3 * N + 4 * HID)

    # ---- the single fused Pallas kernel, grid over batch (parallel on v7x) ----
    out = pl.pallas_call(
        pointflow_kernel,
        out_shape=jax.ShapeDtypeStruct((B, OUT_SUB, OUT_LANES), jnp.float32),
        grid=(B,),
        in_specs=[
            pl.BlockSpec((N, PT_LANES), lambda b: (b, 0)),
            pl.BlockSpec((1, NCLASS, ROW_LANES), lambda b: (b, 0, 0)),
            pl.BlockSpec((PROWS, PARAM_LANES), lambda b: (0, 0)),
        ],
        out_specs=pl.BlockSpec((1, OUT_SUB, OUT_LANES), lambda b: (b, 0, 0)),
        compiler_params=pltpu.CompilerParams(dimension_semantics=("parallel",)),
        cost_estimate=pl.CostEstimate(flops=int(flops),
                                      transcendentals=int(transcendentals),
                                      bytes_accessed=int(bytes_accessed)),
    )(pts, rowdat, pslab)

    stats = out[:, 0, :]                    # (B, 128)
    gll_b = stats[:, 0]                     # per-batch sum of gaussian log-likelihood
    log_py = stats[:, 1:2]                  # (B, 1)
    delta_log_py = stats[:, 2:3]            # (B, 1)
    log_pz_sum = stats[:, 3:4]              # (B, 1) sum over classes (valid-gated delta)
    ent_b = stats[:, 4]                     # per-batch sum of per-class entropies

    # ---- losses (same reductions as the PyTorch forward) ----
    fit_loss = -jnp.sum(gll_b) / float(B * 3 * N)                    # -gll.mean()
    log_px = log_py - delta_log_py                                   # (B, 1)
    log_pz = log_pz_sum / jnp.sum(valid_id, axis=1, keepdims=True)   # (B, 1)
    entropy_mean = jnp.sum(ent_b) / float(B * NCLASS)                # mean over B*K rows

    entropy_loss = -entropy_mean * ENT_W
    recon_loss = -jnp.mean(log_px) * RECON_W
    prior_loss = -jnp.mean(log_pz) * PRIOR_W

    # NOTE: the reference's `z_new = z + (log_pz * 0.0).mean()` is exactly +0 in
    # the forward pass, so it is dropped.
    return {'entropy_loss': entropy_loss, 'recon_loss': recon_loss,
            'prior_loss': prior_loss, 'fit_loss': fit_loss}


# ----------------------------- main --------------------------------
if __name__ == "__main__":
    root = jax.random.PRNGKey(0)
    k_par, k_inp, k_ref, k_seg, k_eps = jax.random.split(root, 5)

    params = init_params(k_par)

    inp = jax.random.normal(k_inp, (B, N, IN_DIM), jnp.float32)
    ref = jax.random.normal(k_ref, (B, N, IN_DIM), jnp.float32)
    seg_mask = jax.random.randint(k_seg, (B, N), 0, NCLASS).astype(jnp.int32)
    attn_map = jax.nn.one_hot(seg_mask, NCLASS, dtype=jnp.float32)
    present = jnp.ones((B, NCLASS), jnp.float32)

    pcds = {'input': inp, 'ref': ref, 'ref_seg_mask': seg_mask,
            'attn_map': attn_map, 'present': present}

    losses = jax.jit(pointflow_forward)(params, pcds, k_eps)
    losses = jax.tree_util.tree_map(jax.block_until_ready, losses)

    for k in ('entropy_loss', 'recon_loss', 'prior_loss', 'fit_loss'):
        v = float(losses[k])
        assert math.isfinite(v), f"{k} is not finite: {v}"

    print("KERNEL_OK")
</pallas_src>

<mosaic_0001>
module attributes {stable_mosaic.version = 11 : i64} {
  func.func @pointflow_kernel(%arg0: i32, %arg1: memref<128x16xf32, #tpu.memory_space<vmem>>, %arg2: memref<1x4x16xf32, #tpu.memory_space<vmem>>, %arg3: memref<232x32xf32, #tpu.memory_space<vmem>>, %arg4: memref<1x8x128xf32, #tpu.memory_space<vmem>>) attributes {dimension_semantics = [#tpu.dimension_semantics<parallel>], iteration_bounds = array<i64: 2>, scalar_prefetch = 0 : i64, scratch_operands = 0 : i64, tpu.core_type = #tpu.core_type<tc>, window_params = [{transform_indices = @transform_0, window_bounds = array<i64: 128, 16>}, {transform_indices = @transform_1, window_bounds = array<i64: 1, 4, 16>}, {pipeline_mode = #tpu.pipeline_mode<synchronous>, transform_indices = @transform_2, window_bounds = array<i64: 232, 32>}, {transform_indices = @transform_3, window_bounds = array<i64: 1, 8, 128>}]} {
    %c0 = arith.constant 0 : index
    %c0_0 = arith.constant 0 : index
    %0 = vector.load %arg1[%c0, %c0_0] : memref<128x16xf32, #tpu.memory_space<vmem>>, vector<128x16xf32>
    %1 = vector.extract_strided_slice %0 {offsets = [0, 0], sizes = [128, 7], strides = [1, 1]} : vector<128x16xf32> to vector<128x7xf32>
    %2 = vector.extract_strided_slice %0 {offsets = [0, 3], sizes = [128, 4], strides = [1, 1]} : vector<128x16xf32> to vector<128x4xf32>
    %3 = vector.extract_strided_slice %0 {offsets = [0, 7], sizes = [128, 3], strides = [1, 1]} : vector<128x16xf32> to vector<128x3xf32>
    %c0_1 = arith.constant 0 : index
    %c0_2 = arith.constant 0 : index
    %c0_3 = arith.constant 0 : index
    %4 = vector.load %arg2[%c0_1, %c0_2, %c0_3] : memref<1x4x16xf32, #tpu.memory_space<vmem>>, vector<1x4x16xf32>
    %5 = vector.shape_cast %4 : vector<1x4x16xf32> to vector<4x16xf32>
    %6 = vector.extract_strided_slice %5 {offsets = [0, 0], sizes = [4, 8], strides = [1, 1]} : vector<4x16xf32> to vector<4x8xf32>
    %7 = vector.extract_strided_slice %5 {offsets = [0, 8], sizes = [4, 1], strides = [1, 1]} : vector<4x16xf32> to vector<4x1xf32>
    %c0_4 = arith.constant 0 : index
    %c0_5 = arith.constant 0 : index
    %8 = vector.load %arg3[%c0_4, %c0_5] : memref<232x32xf32, #tpu.memory_space<vmem>>, vector<7x32xf32>
    %cst = arith.constant dense<0.000000e+00> : vector<128x32xf32>
    %9 = tpu.matmul %1, %8, %cst {dimension_numbers = #tpu.dot_dimension_numbers<[1], [0], [0], [1], [0, 0, 1, 1], [], []>} : vector<128x7xf32>, vector<7x32xf32>, vector<128x32xf32> -> vector<128x32xf32>
    %c8 = arith.constant 8 : index
    %c0_6 = arith.constant 0 : index
    %10 = vector.load %arg3[%c8, %c0_6] : memref<232x32xf32, #tpu.memory_space<vmem>>, vector<1x32xf32>
    %11 = vector.broadcast %10 : vector<1x32xf32> to vector<128x32xf32>
    %12 = arith.addf %9, %11 : vector<128x32xf32>
    %cst_7 = arith.constant 0.000000e+00 : f32
    %13 = vector.broadcast %cst_7 : f32 to vector<128x32xf32>
    %14 = arith.maximumf %12, %13 : vector<128x32xf32>
    %c16 = arith.constant 16 : index
    %c0_8 = arith.constant 0 : index
    %15 = vector.load %arg3[%c16, %c0_8] : memref<232x32xf32, #tpu.memory_space<vmem>>, vector<32x32xf32>
    %cst_9 = arith.constant dense<0.000000e+00> : vector<128x32xf32>
    %16 = tpu.matmul %14, %15, %cst_9 {dimension_numbers = #tpu.dot_dimension_numbers<[1], [0], [0], [1], [0, 0, 1, 1], [], []>} : vector<128x32xf32>, vector<32x32xf32>, vector<128x32xf32> -> vector<128x32xf32>
    %c48 = arith.constant 48 : index
    %c0_10 = arith.constant 0 : index
    %17 = vector.load %arg3[%c48, %c0_10] : memref<232x32xf32, #tpu.memory_space<vmem>>, vector<1x32xf32>
    %18 = vector.broadcast %17 : vector<1x32xf32> to vector<128x32xf32>
    %19 = arith.addf %16, %18 : vector<128x32xf32>
    %cst_11 = arith.constant 0.000000e+00 : f32
    %20 = vector.broadcast %cst_11 : f32 to vector<128x32xf32>
    %21 = arith.maximumf %19, %20 : vector<128x32xf32>
    %22 = vector.extract_strided_slice %2 {offsets = [0, 0], sizes = [128, 1], strides = [1, 1]} : vector<128x4xf32> to vector<128x1xf32>
    %23 = vector.broadcast %22 : vector<128x1xf32> to vector<128x32xf32>
    %24 = arith.mulf %21, %23 : vector<128x32xf32>
    %cst_12 = arith.constant dense<0xFF800000> : vector<32xf32>
    %25 = vector.multi_reduction <maximumf>, %24, %cst_12 [0] : vector<128x32xf32> to vector<32xf32>
    %26 = vector.shape_cast %25 : vector<32xf32> to vector<1x32xf32>
    %27 = vector.extract_strided_slice %2 {offsets = [0, 1], sizes = [128, 1], strides = [1, 1]} : vector<128x4xf32> to vector<128x1xf32>
    %28 = vector.broadcast %27 : vector<128x1xf32> to vector<128x32xf32>
    %29 = arith.mulf %21, %28 : vector<128x32xf32>
    %cst_13 = arith.constant dense<0xFF800000> : vector<32xf32>
    %30 = vector.multi_reduction <maximumf>, %29, %cst_13 [0] : vector<128x32xf32> to vector<32xf32>
    %31 = vector.shape_cast %30 : vector<32xf32> to vector<1x32xf32>
    %32 = vector.extract_strided_slice %2 {offsets = [0, 2], sizes = [128, 1], strides = [1, 1]} : vector<128x4xf32> to vector<128x1xf32>
    %33 = vector.broadcast %32 : vector<128x1xf32> to vector<128x32xf32>
    %34 = arith.mulf %21, %33 : vector<128x32xf32>
    %cst_14 = arith.constant dense<0xFF800000> : vector<32xf32>
    %35 = vector.multi_reduction <maximumf>, %34, %cst_14 [0] : vector<128x32xf32> to vector<32xf32>
    %36 = vector.shape_cast %35 : vector<32xf32> to vector<1x32xf32>
    %37 = vector.extract_strided_slice %2 {offsets = [0, 3], sizes = [128, 1], strides = [1, 1]} : vector<128x4xf32> to vector<128x1xf32>
    %38 = vector.broadcast %37 : vector<128x1xf32> to vector<128x32xf32>
    %39 = arith.mulf %21, %38 : vector<128x32xf32>
    %cst_15 = arith.constant dense<0xFF800000> : vector<32xf32>
    %40 = vector.multi_reduction <maximumf>, %39, %cst_15 [0] : vector<128x32xf32> to vector<32xf32>
    %41 = vector.shape_cast %40 : vector<32xf32> to vector<1x32xf32>
    %42 = tpu.concatenate %26, %31, %36, %41 in 0 : vector<1x32xf32>, vector<1x32xf32>, vector<1x32xf32>, vector<1x32xf32> -> vector<4x32xf32>
    %c56 = arith.constant 56 : index
    %c0_16 = arith.constant 0 : index
    %43 = vector.load %arg3[%c56, %c0_16] : memref<232x32xf32, #tpu.memory_space<vmem>>, vector<32x16xf32>
    %cst_17 = arith.constant dense<0.000000e+00> : vector<4x16xf32>
    %44 = tpu.matmul %42, %43, %cst_17 {dimension_numbers = #tpu.dot_dimension_numbers<[1], [0], [0], [1], [0, 0, 1, 1], [], []>} : vector<4x32xf32>, vector<32x16xf32>, vector<4x16xf32> -> vector<4x16xf32>
    %c88 = arith.constant 88 : index
    %c0_18 = arith.constant 0 : index
    %45 = vector.load %arg3[%c88, %c0_18] : memref<232x32xf32, #tpu.memory_space<vmem>>, vector<1x16xf32>
    %46 = vector.broadcast %45 : vector<1x16xf32> to vector<4x16xf32>
    %47 = arith.addf %44, %46 : vector<4x16xf32>
    %48 = vector.extract_strided_slice %47 {offsets = [0, 0], sizes = [4, 8], strides = [1, 1]} : vector<4x16xf32> to vector<4x8xf32>
    %49 = vector.extract_strided_slice %47 {offsets = [0, 8], sizes = [4, 8], strides = [1, 1]} : vector<4x16xf32> to vector<4x8xf32>
    %cst_19 = arith.constant 5.000000e-01 : f32
    %50 = vector.broadcast %cst_19 : f32 to vector<4x8xf32>
    %51 = arith.mulf %50, %49 : vector<4x8xf32>
    %52 = math.exp %51 : vector<4x8xf32>
    %53 = arith.mulf %52, %6 : vector<4x8xf32>
    %54 = arith.addf %48, %53 : vector<4x8xf32>
    %c96 = arith.constant 96 : index
    %c0_20 = arith.constant 0 : index
    %55 = vector.load %arg3[%c96, %c0_20] : memref<232x32xf32, #tpu.memory_space<vmem>>, vector<8x6xf32>
    %cst_21 = arith.constant dense<0.000000e+00> : vector<4x6xf32>
    %56 = tpu.matmul %54, %55, %cst_21 {dimension_numbers = #tpu.dot_dimension_numbers<[1], [0], [0], [1], [0, 0, 1, 1], [], []>} : vector<4x8xf32>, vector<8x6xf32>, vector<4x6xf32> -> vector<4x6xf32>
    %c104 = arith.constant 104 : index
    %c0_22 = arith.constant 0 : index
    %57 = vector.load %arg3[%c104, %c0_22] : memref<232x32xf32, #tpu.memory_space<vmem>>, vector<1x6xf32>
    %58 = vector.broadcast %57 : vector<1x6xf32> to vector<4x6xf32>
    %59 = arith.addf %56, %58 : vector<4x6xf32>
    %60 = vector.extract_strided_slice %59 {offsets = [0, 0], sizes = [4, 3], strides = [1, 1]} : vector<4x6xf32> to vector<4x3xf32>
    %61 = vector.extract_strided_slice %59 {offsets = [0, 3], sizes = [4, 3], strides = [1, 1]} : vector<4x6xf32> to vector<4x3xf32>
    %cst_23 = arith.constant dense<0.000000e+00> : vector<4xf32>
    %62 = vector.multi_reduction <add>, %49, %cst_23 [1] : vector<4x8xf32> to vector<4xf32>
    %63 = vector.shape_cast %62 : vector<4xf32> to vector<4x1xf32>
    %cst_24 = arith.constant 5.000000e-01 : f32
    %64 = vector.broadcast %cst_24 : f32 to vector<4x1xf32>
    %65 = arith.mulf %64, %63 : vector<4x1xf32>
    %cst_25 = arith.constant 11.3515081 : f32
    %66 = vector.broadcast %cst_25 : f32 to vector<4x1xf32>
    %67 = arith.addf %65, %66 : vector<4x1xf32>
    %cst_26 = arith.constant dense<0.000000e+00> : vector<1xf32>
    %68 = vector.multi_reduction <add>, %67, %cst_26 [0] : vector<4x1xf32> to vector<1xf32>
    %69 = vector.shape_cast %68 : vector<1xf32> to vector<1x1xf32>
    %c112 = arith.constant 112 : index
    %c0_27 = arith.constant 0 : index
    %70 = vector.load %arg3[%c112, %c0_27] : memref<232x32xf32, #tpu.memory_space<vmem>>, vector<4x8xf32>
    %c120 = arith.constant 120 : index
    %c0_28 = arith.constant 0 : index
    %71 = vector.load %arg3[%c120, %c0_28] : memref<232x32xf32, #tpu.memory_space<vmem>>, vector<4x8xf32>
    %72 = math.exp %70 : vector<4x8xf32>
    %73 = arith.mulf %54, %72 : vector<4x8xf32>
    %74 = arith.addf %73, %71 : vector<4x8xf32>
    %cst_29 = arith.constant 5.000000e-01 : f32
    %75 = vector.broadcast %cst_29 : f32 to vector<4x8xf32>
    %76 = arith.mulf %75, %74 : vector<4x8xf32>
    %77 = arith.mulf %76, %74 : vector<4x8xf32>
    %cst_30 = arith.constant -0.918938517 : f32
    %78 = vector.broadcast %cst_30 : f32 to vector<4x8xf32>
    %79 = arith.subf %78, %77 : vector<4x8xf32>
    %cst_31 = arith.constant dense<0.000000e+00> : vector<4xf32>
    %80 = vector.multi_reduction <add>, %79, %cst_31 [1] : vector<4x8xf32> to vector<4xf32>
    %81 = vector.shape_cast %80 : vector<4xf32> to vector<4x1xf32>
    %cst_32 = arith.constant dense<0.000000e+00> : vector<4xf32>
    %82 = vector.multi_reduction <add>, %70, %cst_32 [1] : vector<4x8xf32> to vector<4xf32>
    %83 = vector.shape_cast %82 : vector<4xf32> to vector<4x1xf32>
    %cst_33 = arith.constant 0.000000e+00 : f32
    %84 = vector.broadcast %cst_33 : f32 to vector<4x1xf32>
    %85 = arith.subf %84, %83 : vector<4x1xf32>
    %86 = arith.mulf %85, %7 : vector<4x1xf32>
    %87 = arith.subf %81, %86 : vector<4x1xf32>
    %cst_34 = arith.constant dense<0.000000e+00> : vector<1xf32>
    %88 = vector.multi_reduction <add>, %87, %cst_34 [0] : vector<4x1xf32> to vector<1xf32>
    %89 = vector.shape_cast %88 : vector<1xf32> to vector<1x1xf32>
    %90 = math.exp %61 : vector<4x3xf32>
    %91 = tpu.concatenate %54, %60, %90 in 1 : vector<4x8xf32>, vector<4x3xf32>, vector<4x3xf32> -> vector<4x14xf32>
    %92 = vector.extract_strided_slice %91 {offsets = [0, 0], sizes = [1, 14], strides = [1, 1]} : vector<4x14xf32> to vector<1x14xf32>
    %93 = vector.extract_strided_slice %91 {offsets = [1, 0], sizes = [1, 14], strides = [1, 1]} : vector<4x14xf32> to vector<1x14xf32>
    %94 = vector.extract_strided_slice %91 {offsets = [2, 0], sizes = [1, 14], strides = [1, 1]} : vector<4x14xf32> to vector<1x14xf32>
    %95 = vector.extract_strided_slice %91 {offsets = [3, 0], sizes = [1, 14], strides = [1, 1]} : vector<4x14xf32> to vector<1x14xf32>
    %96 = tpu.concatenate %92, %93, %94, %95 in 1 : vector<1x14xf32>, vector<1x14xf32>, vector<1x14xf32>, vector<1x14xf32> -> vector<1x56xf32>
    %c128 = arith.constant 128 : index
    %c0_35 = arith.constant 0 : index
    %97 = vector.load %arg3[%c128, %c0_35] : memref<232x32xf32, #tpu.memory_space<vmem>>, vector<56x32xf32>
    %cst_36 = arith.constant dense<0.000000e+00> : vector<1x32xf32>
    %98 = tpu.matmul %96, %97, %cst_36 {dimension_numbers = #tpu.dot_dimension_numbers<[1], [0], [0], [1], [0, 0, 1, 1], [], []>} : vector<1x56xf32>, vector<56x32xf32>, vector<1x32xf32> -> vector<1x32xf32>
    %c184 = arith.constant 184 : index
    %c0_37 = arith.constant 0 : index
    %99 = vector.load %arg3[%c184, %c0_37] : memref<232x32xf32, #tpu.memory_space<vmem>>, vector<1x32xf32>
    %100 = arith.addf %98, %99 : vector<1x32xf32>
    %101 = math.tanh %100 : vector<1x32xf32>
    %c192 = arith.constant 192 : index
    %c0_38 = arith.constant 0 : index
    %102 = vector.load %arg3[%c192, %c0_38] : memref<232x32xf32, #tpu.memory_space<vmem>>, vector<32x6xf32>
    %cst_39 = arith.constant dense<0.000000e+00> : vector<1x6xf32>
    %103 = tpu.matmul %101, %102, %cst_39 {dimension_numbers = #tpu.dot_dimension_numbers<[1], [0], [0], [1], [0, 0, 1, 1], [], []>} : vector<1x32xf32>, vector<32x6xf32>, vector<1x6xf32> -> vector<1x6xf32>
    %c224 = arith.constant 224 : index
    %c0_40 = arith.constant 0 : index
    %104 = vector.load %arg3[%c224, %c0_40] : memref<232x32xf32, #tpu.memory_space<vmem>>, vector<1x6xf32>
    %105 = arith.addf %103, %104 : vector<1x6xf32>
    %106 = vector.extract_strided_slice %105 {offsets = [0, 0], sizes = [1, 3], strides = [1, 1]} : vector<1x6xf32> to vector<1x3xf32>
    %107 = vector.extract_strided_slice %105 {offsets = [0, 3], sizes = [1, 3], strides = [1, 1]} : vector<1x6xf32> to vector<1x3xf32>
    %cst_41 = arith.constant dense<0.000000e+00> : vector<128x6xf32>
    %108 = tpu.matmul %2, %59, %cst_41 {dimension_numbers = #tpu.dot_dimension_numbers<[1], [0], [0], [1], [0, 0, 1, 1], [], []>} : vector<128x4xf32>, vector<4x6xf32>, vector<128x6xf32> -> vector<128x6xf32>
    %109 = vector.extract_strided_slice %108 {offsets = [0, 0], sizes = [128, 3], strides = [1, 1]} : vector<128x6xf32> to vector<128x3xf32>
    %110 = arith.subf %3, %109 : vector<128x3xf32>
    %111 = vector.extract_strided_slice %108 {offsets = [0, 3], sizes = [128, 3], strides = [1, 1]} : vector<128x6xf32> to vector<128x3xf32>
    %cst_42 = arith.constant 1.83787704 : f32
    %112 = vector.broadcast %cst_42 : f32 to vector<128x3xf32>
    %113 = arith.addf %112, %111 : vector<128x3xf32>
    %114 = arith.mulf %110, %110 : vector<128x3xf32>
    %cst_43 = arith.constant 0.000000e+00 : f32
    %115 = vector.broadcast %cst_43 : f32 to vector<128x3xf32>
    %116 = arith.subf %115, %111 : vector<128x3xf32>
    %117 = math.exp %116 : vector<128x3xf32>
    %118 = arith.mulf %114, %117 : vector<128x3xf32>
    %119 = arith.addf %113, %118 : vector<128x3xf32>
    %cst_44 = arith.constant -5.000000e-01 : f32
    %120 = vector.broadcast %cst_44 : f32 to vector<128x3xf32>
    %121 = arith.mulf %120, %119 : vector<128x3xf32>
    %cst_45 = arith.constant dense<0.000000e+00> : vector<3xf32>
    %122 = vector.multi_reduction <add>, %121, %cst_45 [0] : vector<128x3xf32> to vector<3xf32>
    %123 = vector.shape_cast %122 : vector<3xf32> to vector<1x3xf32>
    %cst_46 = arith.constant dense<0.000000e+00> : vector<1xf32>
    %124 = vector.multi_reduction <add>, %123, %cst_46 [1] : vector<1x3xf32> to vector<1xf32>
    %125 = vector.shape_cast %124 : vector<1xf32> to vector<1x1xf32>
    %126 = math.exp %106 : vector<1x3xf32>
    %127 = vector.broadcast %126 : vector<1x3xf32> to vector<128x3xf32>
    %128 = arith.mulf %3, %127 : vector<128x3xf32>
    %129 = vector.broadcast %107 : vector<1x3xf32> to vector<128x3xf32>
    %130 = arith.addf %128, %129 : vector<128x3xf32>
    %cst_47 = arith.constant 5.000000e-01 : f32
    %131 = vector.broadcast %cst_47 : f32 to vector<128x3xf32>
    %132 = arith.mulf %131, %130 : vector<128x3xf32>
    %133 = arith.mulf %132, %130 : vector<128x3xf32>
    %cst_48 = arith.constant -0.918938517 : f32
    %134 = vector.broadcast %cst_48 : f32 to vector<128x3xf32>
    %135 = arith.subf %134, %133 : vector<128x3xf32>
    %cst_49 = arith.constant dense<0.000000e+00> : vector<3xf32>
    %136 = vector.multi_reduction <add>, %135, %cst_49 [0] : vector<128x3xf32> to vector<3xf32>
    %137 = vector.shape_cast %136 : vector<3xf32> to vector<1x3xf32>
    %cst_50 = arith.constant dense<0.000000e+00> : vector<1xf32>
    %138 = vector.multi_reduction <add>, %137, %cst_50 [1] : vector<1x3xf32> to vector<1xf32>
    %139 = vector.shape_cast %138 : vector<1xf32> to vector<1x1xf32>
    %cst_51 = arith.constant dense<0.000000e+00> : vector<1xf32>
    %140 = vector.multi_reduction <add>, %106, %cst_51 [1] : vector<1x3xf32> to vector<1xf32>
    %141 = vector.shape_cast %140 : vector<1xf32> to vector<1x1xf32>
    %cst_52 = arith.constant -1.280000e+02 : f32
    %142 = vector.broadcast %cst_52 : f32 to vector<1x1xf32>
    %143 = arith.mulf %142, %141 : vector<1x1xf32>
    %cst_53 = arith.constant 0.000000e+00 : f32
    %144 = vector.broadcast %cst_53 : f32 to vector<1x123xf32>
    %145 = tpu.concatenate %125, %139, %143, %89, %69, %144 in 1 : vector<1x1xf32>, vector<1x1xf32>, vector<1x1xf32>, vector<1x1xf32>, vector<1x1xf32>, vector<1x123xf32> -> vector<1x128xf32>
    %cst_54 = arith.constant 0.000000e+00 : f32
    %146 = vector.broadcast %cst_54 : f32 to vector<7x128xf32>
    %147 = tpu.concatenate %145, %146 in 0 : vector<1x128xf32>, vector<7x128xf32> -> vector<8x128xf32>
    %c0_55 = arith.constant 0 : index
    %c0_56 = arith.constant 0 : index
    %c0_57 = arith.constant 0 : index
    %148 = vector.load %arg4[%c0_55, %c0_56, %c0_57] : memref<1x8x128xf32, #tpu.memory_space<vmem>>, vector<1x8x128xf32>
    %149 = vector.shape_cast %148 : vector<1x8x128xf32> to vector<8x128xf32>
    %150 = vector.shape_cast %147 : vector<8x128xf32> to vector<1x8x128xf32>
    tpu.vector_store %arg4[%c0_55, %c0_56, %c0_57], %150 {strides = array<i32>} : memref<1x8x128xf32, #tpu.memory_space<vmem>>, vector<1x8x128xf32>,
    return
  }
  func.func @transform_0(%arg0: i32) -> (i32, i32) {
    %c0_i32 = arith.constant 0 : i32
    %c0_i32_0 = arith.constant 0 : i32
    return %arg0, %c0_i32 : i32, i32
  }
  func.func @transform_1(%arg0: i32) -> (i32, i32, i32) {
    %c0_i32 = arith.constant 0 : i32
    %c0_i32_0 = arith.constant 0 : i32
    %c0_i32_1 = arith.constant 0 : i32
    return %arg0, %c0_i32, %c0_i32_0 : i32, i32, i32
  }
  func.func @transform_2(%arg0: i32) -> (i32, i32) {
    %c0_i32 = arith.constant 0 : i32
    %c0_i32_0 = arith.constant 0 : i32
    %c0_i32_1 = arith.constant 0 : i32
    return %c0_i32, %c0_i32_0 : i32, i32
  }
  func.func @transform_3(%arg0: i32) -> (i32, i32, i32) {
    %c0_i32 = arith.constant 0 : i32
    %c0_i32_0 = arith.constant 0 : i32
    %c0_i32_1 = arith.constant 0 : i32
    return %arg0, %c0_i32, %c0_i32_0 : i32, i32, i32
  }
}

</mosaic_0001>

<llo_original>
// kernel: pointflow_forward.1
$region0: #{pointflow_forward.1}
  #allocation0 [shape = 'u32[]', space=smem, size = 0x4, offset = 0x4, fixed_abs, tag = 'smem constant byte address 0x4 - core index']
  #allocation1 [shape = 'u32[144,128]{1,0:T(1,128)}', space=vmem, size = 0x12000, scoped, tag = 'internal scratch']
  %s0 = inlined_call_operand.vmem [shape: f32[256,16], index: 0, kind: input, shape index: {}]
  %s1 = inlined_call_operand.vmem [shape: f32[2,4,16], index: 1, kind: input, shape index: {}]
  %s2 = inlined_call_operand.vmem [shape: f32[232,32], index: 2, kind: input, shape index: {}]
  %s3 = inlined_call_operand.vmem [shape: f32[2,8,128], index: 3, kind: output, shape index: {}]
  %s4 = sld [smem:[#allocation0]]
  $region45: #{pointflow_forward.1} parent=0
    _
  %s6 = ssub.s32 1, %s4
  %s7 = scalar_select 0, %s6, %s4
  loop: start=0, step=1, limit=4
  $region2: #{pointflow_forward.1} parent=0 // loop_pre_header
    _
  $region3: #{pointflow_forward.1} parent=0 // loop_header
    %s9 = sphi 0, %s13
    %p10 = scmp.ge.s32.totalorder %s9, 4
    %s19 = sphi 0, %s21
    %s22 = sphi 0, %s19
    %s23 = sphi 0, %s22
    %s39 = sphi 0, %s23
    %s45 = sphi 0, %s47
    %s48 = sphi 0, %s45
    %s49 = sphi 0, %s48
    %s65 = sphi 0, %s49
    %s69 = sphi 0, %s69
    %s71 = sphi 0, %s69
    %s72 = sphi 0, %s71
    %s86 = sphi 0, %s72
    %s92 = sphi 0, %s94
    %s95 = sphi 0, %s92
    %s96 = sphi 0, %s95
    %s112 = sphi 0, %s96
  $region4: #{pointflow_forward.1} parent=0 // loop_header_branch
    %12 = sbr.rel (%p10) target = $region8
  $region5: #{pointflow_forward.1} parent=0 // loop_body
    %s14 = ssub.s32 %s9, 1
    %s15 = ssub.s32 %s9, 2
    %s16 = sadd.s32 %s9, 1
    %s17 = ssub.s32 %s9, %s16
    %p18 = scmp.eq.s32.totalorder %s17, 0
    %s20 = sadd.s32 %s19, 1
    %s21 = scalar_select %p18, %s19, %s20
    %p24 = pneg %p18
    %p25 = scmp.eq.s32.totalorder %s9, 1
    %p26 = por %p24, %p25
    %p27 = scmp.ne.s32.totalorder %s19, %s22
    %p28 = scmp.eq.s32.totalorder %s9, 0
    %p29 = por %p27, %p28
    %p30 = scmp.ne.s32.totalorder %s19, %s22
    %p31 = scmp.eq.s32.totalorder %s14, 1
    %p32 = por %p30, %p31
    %p33 = scmp.ne.s32.totalorder %s22, %s23
    %p34 = scmp.eq.s32.totalorder %s14, 0
    %p35 = por %p33, %p34
    %p36 = scmp.ne.s32.totalorder %s22, %s23
    %p37 = scmp.eq.s32.totalorder %s15, 1
    %p38 = por %p36, %p37
    %p40 = scmp.ne.s32.totalorder %s23, %s39
    %p41 = scmp.eq.s32.totalorder %s15, 0
    %p42 = por %p40, %p41
    %s43 = ssub.s32 %s9, %s16
    %p44 = scmp.eq.s32.totalorder %s43, 0
    %s46 = sadd.s32 %s45, 1
    %s47 = scalar_select %p44, %s45, %s46
    %p50 = pneg %p44
    %p51 = scmp.eq.s32.totalorder %s9, 1
    %p52 = por %p50, %p51
    %p53 = scmp.ne.s32.totalorder %s45, %s48
    %p54 = scmp.eq.s32.totalorder %s9, 0
    %p55 = por %p53, %p54
    %p56 = scmp.ne.s32.totalorder %s45, %s48
    %p57 = scmp.eq.s32.totalorder %s14, 1
    %p58 = por %p56, %p57
    %p59 = scmp.ne.s32.totalorder %s48, %s49
    %p60 = scmp.eq.s32.totalorder %s14, 0
    %p61 = por %p59, %p60
    %p62 = scmp.ne.s32.totalorder %s48, %s49
    %p63 = scmp.eq.s32.totalorder %s15, 1
    %p64 = por %p62, %p63
    %p66 = scmp.ne.s32.totalorder %s49, %s65
    %p67 = scmp.eq.s32.totalorder %s15, 0
    %p68 = por %p66, %p67
    %s70 = sadd.s32 %s69, 1
    %p73 = scmp.eq.s32.totalorder %s9, 1
    %p74 = scmp.ne.s32.totalorder %s69, %s71
    %p75 = scmp.eq.s32.totalorder %s9, 0
    %p76 = por %p74, %p75
    %p77 = scmp.ne.s32.totalorder %s69, %s71
    %p78 = scmp.eq.s32.totalorder %s14, 1
    %p79 = por %p77, %p78
    %p80 = scmp.ne.s32.totalorder %s71, %s72
    %p81 = scmp.eq.s32.totalorder %s14, 0
    %p82 = por %p80, %p81
    %p83 = scmp.ne.s32.totalorder %s71, %s72
    %p84 = scmp.eq.s32.totalorder %s15, 1
    %p85 = por %p83, %p84
    %p87 = scmp.ne.s32.totalorder %s72, %s86
    %p88 = scmp.eq.s32.totalorder %s15, 0
    %p89 = por %p87, %p88
    %s90 = ssub.s32 %s9, %s16
    %p91 = scmp.eq.s32.totalorder %s90, 0
    %s93 = sadd.s32 %s92, 1
    %s94 = scalar_select %p91, %s92, %s93
    %p97 = pneg %p91
    %p98 = scmp.eq.s32.totalorder %s9, 1
    %p99 = por %p97, %p98
    %p100 = scmp.ne.s32.totalorder %s92, %s95
    %p101 = scmp.eq.s32.totalorder %s9, 0
    %p102 = por %p100, %p101
    %p103 = scmp.ne.s32.totalorder %s92, %s95
    %p104 = scmp.eq.s32.totalorder %s14, 1
    %p105 = por %p103, %p104
    %p106 = scmp.ne.s32.totalorder %s95, %s96
    %p107 = scmp.eq.s32.totalorder %s14, 0
    %p108 = por %p106, %p107
    %p109 = scmp.ne.s32.totalorder %s95, %s96
    %p110 = scmp.eq.s32.totalorder %s15, 1
    %p111 = por %p109, %p110
    %p113 = scmp.ne.s32.totalorder %s96, %s112
    %p114 = scmp.eq.s32.totalorder %s15, 0
    %p115 = por %p113, %p114
    %p116 = scmp.le.s32.totalorder 1, %s9
    %p117 = scmp.lt.s32.totalorder %s9, 3
    %p118 = pnand %p116, %p117
    %p119 = pneg %p118
    // Predicated region
    $region9: #{pointflow_forward.1} parent=5 // pred_check
      _
    $region10: #{pointflow_forward.1} parent=5 // pred_check_branch
      %121 = sbr.rel (%p118) target = $region12
    $region11: #{pointflow_forward.1} parent=5 // pred_region
      %s122 = ssub.s32 %s9, 1
      // Predicated region
      $region13: #{pointflow_forward.1} parent=11 // pred_check
        %p123 = pneg %p82
      $region14: #{pointflow_forward.1} parent=11 // pred_check_branch
        %125 = sbr.rel (%p123) target = $region16
      $region15: #{pointflow_forward.1} parent=11 // pred_region
        _
      $region16: #{pointflow_forward.1} parent=11 // pred_fallthru
        _
    $region12: #{pointflow_forward.1} parent=5 // pred_fallthru
      _
    %p126 = scmp.lt.s32.totalorder %s9, 2
    // Predicated region
    $region17: #{pointflow_forward.1} parent=5 // pred_check
      %p127 = pneg %p126
    $region18: #{pointflow_forward.1} parent=5 // pred_check_branch
      %129 = sbr.rel (%p127) target = $region20
    $region19: #{pointflow_forward.1} parent=5 // pred_region
      // Predicated region
      $region21: #{pointflow_forward.1} parent=19 // pred_check
        %p130 = pneg %p29
      $region22: #{pointflow_forward.1} parent=19 // pred_check_branch
        %132 = sbr.rel (%p130) target = $region24
      $region23: #{pointflow_forward.1} parent=19 // pred_region
        %s133 = smul.u32 16, %s9
        %p134 = scmp.lt.s32.totalorder %s133, 31
        %s135 = scalar_select %p134, %s133, 31
        %s136 = smul.addr %s135, 8
        %s137 = scalar_lea.vmem %s0, %s136
        %s138 = smul.u32 16, %s9
      $region24: #{pointflow_forward.1} parent=19 // pred_fallthru
        _
      // Predicated region
      $region25: #{pointflow_forward.1} parent=19 // pred_check
        %p139 = pneg %p55
      $region26: #{pointflow_forward.1} parent=19 // pred_check_branch
        %141 = sbr.rel (%p139) target = $region28
      $region27: #{pointflow_forward.1} parent=19 // pred_region
        %p142 = scmp.lt.s32.totalorder %s9, 1
        %s143 = scalar_select %p142, %s9, 1
        %s144 = smul.addr %s143, 4
        %s145 = scalar_lea.vmem %s1, %s144
      $region28: #{pointflow_forward.1} parent=19 // pred_fallthru
        _
    $region20: #{pointflow_forward.1} parent=5 // pred_fallthru
      _
    %p146 = scmp.le.s32.totalorder 1, %s9
    %p147 = scmp.lt.s32.totalorder %s9, 3
    %p148 = pnand %p146, %p147
    %p149 = pneg %p148
    // Predicated region
    $region29: #{pointflow_forward.1} parent=5 // pred_check
      _
    $region30: #{pointflow_forward.1} parent=5 // pred_check_branch
      %151 = sbr.rel (%p148) target = $region32
    $region31: #{pointflow_forward.1} parent=5 // pred_region
      %s152 = ssub.s32 %s9, 1
      %s153 = smul.u32 16, %s14
      %p154 = scmp.lt.s32.totalorder %s153, 31
      %s155 = scalar_select %p154, %s153, 31
      %s156 = smul.addr %s155, 8
      %s157 = scalar_lea.vmem %s0, %s156
      %p158 = pneg %p35
      %p159 = pneg %p32
      %p160 = scmp.lt.s32.totalorder %s14, 1
      %s161 = scalar_select %p160, %s14, 1
      %s162 = smul.addr %s161, 4
      %s163 = scalar_lea.vmem %s1, %s162
      %p164 = pneg %p61
      %p165 = pneg %p58
      %p166 = pneg %p82
      %p167 = pneg %p79
      %p168 = pneg %p108
      %p169 = pneg %p105
      %p170 = scmp.lt.s32.totalorder %s14, 1
      %s171 = scalar_select %p170, %s14, 1
      %s172 = smul.addr %s171, 8
      %s173 = scalar_lea.vmem %s3, %s172
      %s174 = smul.u32 16, %s14
      %p175 = scmp.lt.s32.totalorder %s174, 31
      %s176 = scalar_select %p175, %s174, 31
      %s177 = smul.addr %s176, 8
      %s178 = scalar_lea.vmem %s0, %s177
      %s179 = smul.u32 16, %s14
      %p180 = scmp.lt.s32.totalorder %s14, 1
      %s181 = scalar_select %p180, %s14, 1
      %s182 = smul.addr %s181, 4
      %s183 = scalar_lea.vmem %s1, %s182
      %p184 = scmp.lt.s32.totalorder %s14, 1
      %s185 = scalar_select %p184, %s14, 1
      %s186 = smul.addr %s185, 8
      %s187 = scalar_lea.vmem %s3, %s186
      %v188 = vld [vmem:[%s178] sm:$0xff]
      %v189 = vld [vmem:[%s178 + $0x8] sm:$0xff]
      %v190 = vld [vmem:[%s178 + $0x10] sm:$0xff]
      %v191 = vld [vmem:[%s178 + $0x18] sm:$0xff]
      %v192 = vld [vmem:[%s178 + $0x20] sm:$0xff]
      %v193 = vld [vmem:[%s178 + $0x28] sm:$0xff]
      %v194 = vld [vmem:[%s178 + $0x30] sm:$0xff]
      %v195 = vld [vmem:[%s178 + $0x38] sm:$0xff]
      %v196 = vld [vmem:[%s178 + $0x40] sm:$0xff]
      %v197 = vld [vmem:[%s178 + $0x48] sm:$0xff]
      %v198 = vld [vmem:[%s178 + $0x50] sm:$0xff]
      %v199 = vld [vmem:[%s178 + $0x58] sm:$0xff]
      %v200 = vld [vmem:[%s178 + $0x60] sm:$0xff]
      %v201 = vld [vmem:[%s178 + $0x68] sm:$0xff]
      %v202 = vld [vmem:[%s178 + $0x70] sm:$0xff]
      %v203 = vld [vmem:[%s178 + $0x78] sm:$0xff]
      %v204 = vld [vmem:[%s183] sm:$0xf]
      %v205 = vld [vmem:[%s2] sm:$0x7f]
      %v206 = vld [vmem:[%s2 + $0x8] sm:$0x1]
      %v207 = vlaneseq
      %v208 = vshrl.u32 %v207, 7
      %v209 = vsub.s32 0, %v208
      %v210 = vrot.slane %v206, %v209
      %vm211 = vcmask 56320
      %v213 = vsel %vm211, %v188, 0
      %v216 = vsel %vm211, %v189, 0
      %v219 = vsel %vm211, %v190, 0
      %v222 = vsel %vm211, %v191, 0
      %v225 = vsel %vm211, %v192, 0
      %v228 = vsel %vm211, %v193, 0
      %v231 = vsel %vm211, %v194, 0
      %v234 = vsel %vm211, %v195, 0
      %v237 = vsel %vm211, %v196, 0
      %v240 = vsel %vm211, %v197, 0
      %v243 = vsel %vm211, %v198, 0
      %v246 = vsel %vm211, %v199, 0
      %v249 = vsel %vm211, %v200, 0
      %v252 = vsel %vm211, %v201, 0
      %v255 = vsel %vm211, %v202, 0
      %v258 = vsel %vm211, %v203, 0
      %vm260 = vcmask 1046528
      %v262 = vsel %vm260, %v205, 0
      %264 = vmatprep.subr.mxu0 0.0
      %265 = vmatpush1.msra.mxu0 0.0
      %266 = vmatprep.subr.mxu0 0.0
      %267 = vmatpush1.msra.mxu0 0.0
      %268 = vmatprep.subr.mxu0 0.0
      %269 = vmatpush1.msra.mxu0 0.0
      %270 = vmatprep.subr.mxu0 0.0
      %271 = vmatpush1.msra.mxu0 0.0
      %272 = vmatprep.subr.mxu0 0.0
      %273 = vmatpush1.msra.mxu0 0.0
      %274 = vmatprep.subr.mxu0 0.0
      %275 = vmatpush1.msra.mxu0 0.0
      %276 = vmatprep.subr.mxu0 0.0
      %277 = vmatpush1.msra.mxu0 0.0
      %278 = vmatprep.subr.mxu0 0.0
      %279 = vmatpush1.msra.mxu0 0.0
      %280 = vmatprep.subr.mxu0 0.0
      %281 = vmatpush1.msra.mxu0 0.0
      %282 = vmatprep.subr.mxu0 0.0
      %283 = vmatpush1.msra.mxu0 0.0
      %284 = vmatprep.subr.mxu0 0.0
      %285 = vmatpush1.msra.mxu0 0.0
      %286 = vmatprep.subr.mxu0 0.0
      %287 = vmatpush1.msra.mxu0 0.0
      %288 = vmatprep.subr.mxu0 0.0
      %289 = vmatpush1.msra.mxu0 0.0
      %290 = vmatprep.subr.mxu0 0.0
      %291 = vmatpush1.msra.mxu0 0.0
      %292 = vmatprep.subr.mxu0 0.0
      %293 = vmatpush1.msra.mxu0 0.0
      %294 = vmatprep.subr.mxu0 0.0
      %295 = vmatpush1.msra.mxu0 %v262
      %296 = vmatprep.subr.mxu0 0.0
      %297 = vmatpush2.msra.mxu0 0.0
      %298 = vmatprep.subr.mxu0 0.0
      %299 = vmatpush2.msra.mxu0 0.0
      %300 = vmatprep.subr.mxu0 0.0
      %301 = vmatpush2.msra.mxu0 0.0
      %302 = vmatprep.subr.mxu0 0.0
      %303 = vmatpush2.msra.mxu0 0.0
      %304 = vmatprep.subr.mxu0 0.0
      %305 = vmatpush2.msra.mxu0 0.0
      %306 = vmatprep.subr.mxu0 0.0
      %307 = vmatpush2.msra.mxu0 0.0
      %308 = vmatprep.subr.mxu0 0.0
      %309 = vmatpush2.msra.mxu0 0.0
      %310 = vmatprep.subr.mxu0 0.0
      %311 = vmatpush2.msra.mxu0 0.0
      %312 = vmatprep.subr.mxu0 0.0
      %313 = vmatpush2.msra.mxu0 0.0
      %314 = vmatprep.subr.mxu0 0.0
      %315 = vmatpush2.msra.mxu0 0.0
      %316 = vmatprep.subr.mxu0 0.0
      %317 = vmatpush2.msra.mxu0 0.0
      %318 = vmatprep.subr.mxu0 0.0
      %319 = vmatpush2.msra.mxu0 0.0
      %320 = vmatprep.subr.mxu0 0.0
      %321 = vmatpush2.msra.mxu0 0.0
      %322 = vmatprep.subr.mxu0 0.0
      %323 = vmatpush2.msra.mxu0 0.0
      %324 = vmatprep.subr.mxu0 0.0
      %325 = vmatpush2.msra.mxu0 0.0
      %326 = vmatprep.subr.mxu0 0.0
      %327 = vmatpush2.msra.mxu0 0.0
      %328 = vmatprep.mubr.f32.mxu0 0.0
      %329 = vmatmul.mubr.f32.gmra.mxu0 %v213
      %v330 = vpop.f32.mrf.mxu0
      %v331 = vadd.f32 %v210, %v330
      %v332 = vpop.f32.mrf.mxu0
      %333 = vmatprep.mubr.f32.mxu0 0.0
      %334 = vmatmul.mubr.f32.gmra.mxu0 %v216
      %v335 = vpop.f32.mrf.mxu0
      %v336 = vadd.f32 %v210, %v335
      %v337 = vpop.f32.mrf.mxu0
      %338 = vmatprep.mubr.f32.mxu0 0.0
      %339 = vmatmul.mubr.f32.gmra.mxu0 %v219
      %v340 = vpop.f32.mrf.mxu0
      %v341 = vadd.f32 %v210, %v340
      %v342 = vpop.f32.mrf.mxu0
      %343 = vmatprep.mubr.f32.mxu0 0.0
      %344 = vmatmul.mubr.f32.gmra.mxu0 %v222
      %v345 = vpop.f32.mrf.mxu0
      %v346 = vadd.f32 %v210, %v345
      %v347 = vpop.f32.mrf.mxu0
      %348 = vmatprep.mubr.f32.mxu0 0.0
      %349 = vmatmul.mubr.f32.gmra.mxu0 %v225
      %v350 = vpop.f32.mrf.mxu0
      %v351 = vadd.f32 %v210, %v350
      %v352 = vpop.f32.mrf.mxu0
      %353 = vmatprep.mubr.f32.mxu0 0.0
      %354 = vmatmul.mubr.f32.gmra.mxu0 %v228
      %v355 = vpop.f32.mrf.mxu0
      %v356 = vadd.f32 %v210, %v355
      %v357 = vpop.f32.mrf.mxu0
      %358 = vmatprep.mubr.f32.mxu0 0.0
      %359 = vmatmul.mubr.f32.gmra.mxu0 %v231
      %v360 = vpop.f32.mrf.mxu0
      %v361 = vadd.f32 %v210, %v360
      %v362 = vpop.f32.mrf.mxu0
      %363 = vmatprep.mubr.f32.mxu0 0.0
      %364 = vmatmul.mubr.f32.gmra.mxu0 %v234
      %v365 = vpop.f32.mrf.mxu0
      %v366 = vadd.f32 %v210, %v365
      %v367 = vpop.f32.mrf.mxu0
      %368 = vmatprep.mubr.f32.mxu0 0.0
      %369 = vmatmul.mubr.f32.gmra.mxu0 %v237
      %v370 = vpop.f32.mrf.mxu0
      %v371 = vadd.f32 %v210, %v370
      %v372 = vpop.f32.mrf.mxu0
      %373 = vmatprep.mubr.f32.mxu0 0.0
      %374 = vmatmul.mubr.f32.gmra.mxu0 %v240
      %v375 = vpop.f32.mrf.mxu0
      %v376 = vadd.f32 %v210, %v375
      %v377 = vpop.f32.mrf.mxu0
      %378 = vmatprep.mubr.f32.mxu0 0.0
      %379 = vmatmul.mubr.f32.gmra.mxu0 %v243
      %v380 = vpop.f32.mrf.mxu0
      %v381 = vadd.f32 %v210, %v380
      %v382 = vpop.f32.mrf.mxu0
      %383 = vmatprep.mubr.f32.mxu0 0.0
      %384 = vmatmul.mubr.f32.gmra.mxu0 %v246
      %v385 = vpop.f32.mrf.mxu0
      %v386 = vadd.f32 %v210, %v385
      %v387 = vpop.f32.mrf.mxu0
      %388 = vmatprep.mubr.f32.mxu0 0.0
      %389 = vmatmul.mubr.f32.gmra.mxu0 %v249
      %v390 = vpop.f32.mrf.mxu0
      %v391 = vadd.f32 %v210, %v390
      %v392 = vpop.f32.mrf.mxu0
      %393 = vmatprep.mubr.f32.mxu0 0.0
      %394 = vmatmul.mubr.f32.gmra.mxu0 %v252
      %v395 = vpop.f32.mrf.mxu0
      %v396 = vadd.f32 %v210, %v395
      %v397 = vpop.f32.mrf.mxu0
      %398 = vmatprep.mubr.f32.mxu0 0.0
      %399 = vmatmul.mubr.f32.gmra.mxu0 %v255
      %v400 = vpop.f32.mrf.mxu0
      %v401 = vadd.f32 %v210, %v400
      %v402 = vpop.f32.mrf.mxu0
      %403 = vmatprep.mubr.f32.mxu0 0.0
      %404 = vmatmul.mubr.f32.gmra.mxu0 %v258
      %v405 = vpop.f32.mrf.mxu0
      %v406 = vadd.f32 %v210, %v405
      %v407 = vpop.f32.mrf.mxu0
      %408 = vdwg.mxu0
      %v409 = vmax.f32 %v331, 0.0
      %v410 = vmax.f32 %v336, 0.0
      %v411 = vmax.f32 %v341, 0.0
      %v412 = vmax.f32 %v346, 0.0
      %v413 = vmax.f32 %v351, 0.0
      %v414 = vmax.f32 %v356, 0.0
      %v415 = vmax.f32 %v361, 0.0
      %v416 = vmax.f32 %v366, 0.0
      %v417 = vmax.f32 %v371, 0.0
      %v418 = vmax.f32 %v376, 0.0
      %v419 = vmax.f32 %v381, 0.0
      %v420 = vmax.f32 %v386, 0.0
      %v421 = vmax.f32 %v391, 0.0
      %v422 = vmax.f32 %v396, 0.0
      %v423 = vmax.f32 %v401, 0.0
      %v424 = vmax.f32 %v406, 0.0
      %v425 = vld [vmem:[%s2 + $0x10] sm:$0xff]
      %v426 = vld [vmem:[%s2 + $0x18] sm:$0xff]
      %v427 = vld [vmem:[%s2 + $0x20] sm:$0xff]
      %v428 = vld [vmem:[%s2 + $0x28] sm:$0xff]
      %v429 = vld [vmem:[%s2 + $0x30] sm:$0x1]
      %v430 = vlaneseq
      %v431 = vshrl.u32 %v430, 7
      %v432 = vsub.s32 0, %v431
      %v433 = vrot.slane %v429, %v432
      %vm434 = vcmask 261120
      %v436 = vsel %vm434, %v409, 0
      %v439 = vsel %vm434, %v410, 0
      %v442 = vsel %vm434, %v411, 0
      %v445 = vsel %vm434, %v412, 0
      %v448 = vsel %vm434, %v413, 0
      %v451 = vsel %vm434, %v414, 0
      %v454 = vsel %vm434, %v415, 0
      %v457 = vsel %vm434, %v416, 0
      %v460 = vsel %vm434, %v417, 0
      %v463 = vsel %vm434, %v418, 0
      %v466 = vsel %vm434, %v419, 0
      %v469 = vsel %vm434, %v420, 0
      %v472 = vsel %vm434, %v421, 0
      %v475 = vsel %vm434, %v422, 0
      %v478 = vsel %vm434, %v423, 0
      %v481 = vsel %vm434, %v424, 0
      %483 = vmatprep.subr.mxu0 0.0
      %484 = vmatpush1.msra.mxu0 0.0
      %485 = vmatprep.subr.mxu0 0.0
      %486 = vmatpush1.msra.mxu0 0.0
      %487 = vmatprep.subr.mxu0 0.0
      %488 = vmatpush1.msra.mxu0 0.0
      %489 = vmatprep.subr.mxu0 0.0
      %490 = vmatpush1.msra.mxu0 0.0
      %491 = vmatprep.subr.mxu0 0.0
      %492 = vmatpush1.msra.mxu0 0.0
      %493 = vmatprep.subr.mxu0 0.0
      %494 = vmatpush1.msra.mxu0 0.0
      %495 = vmatprep.subr.mxu0 0.0
      %496 = vmatpush1.msra.mxu0 0.0
      %497 = vmatprep.subr.mxu0 0.0
      %498 = vmatpush1.msra.mxu0 0.0
      %499 = vmatprep.subr.mxu0 0.0
      %500 = vmatpush1.msra.mxu0 0.0
      %501 = vmatprep.subr.mxu0 0.0
      %502 = vmatpush1.msra.mxu0 0.0
      %503 = vmatprep.subr.mxu0 0.0
      %504 = vmatpush1.msra.mxu0 0.0
      %505 = vmatprep.subr.mxu0 0.0
      %506 = vmatpush1.msra.mxu0 0.0
      %507 = vmatprep.subr.mxu0 0.0
      %508 = vmatpush1.msra.mxu0 %v428
      %509 = vmatprep.subr.mxu0 0.0
      %510 = vmatpush1.msra.mxu0 %v427
      %511 = vmatprep.subr.mxu0 0.0
      %512 = vmatpush1.msra.mxu0 %v426
      %513 = vmatprep.subr.mxu0 0.0
      %514 = vmatpush1.msra.mxu0 %v425
      %515 = vmatprep.subr.mxu0 0.0
      %516 = vmatpush2.msra.mxu0 0.0
      %517 = vmatprep.subr.mxu0 0.0
      %518 = vmatpush2.msra.mxu0 0.0
      %519 = vmatprep.subr.mxu0 0.0
      %520 = vmatpush2.msra.mxu0 0.0
      %521 = vmatprep.subr.mxu0 0.0
      %522 = vmatpush2.msra.mxu0 0.0
      %523 = vmatprep.subr.mxu0 0.0
      %524 = vmatpush2.msra.mxu0 0.0
      %525 = vmatprep.subr.mxu0 0.0
      %526 = vmatpush2.msra.mxu0 0.0
      %527 = vmatprep.subr.mxu0 0.0
      %528 = vmatpush2.msra.mxu0 0.0
      %529 = vmatprep.subr.mxu0 0.0
      %530 = vmatpush2.msra.mxu0 0.0
      %531 = vmatprep.subr.mxu0 0.0
      %532 = vmatpush2.msra.mxu0 0.0
      %533 = vmatprep.subr.mxu0 0.0
      %534 = vmatpush2.msra.mxu0 0.0
      %535 = vmatprep.subr.mxu0 0.0
      %536 = vmatpush2.msra.mxu0 0.0
      %537 = vmatprep.subr.mxu0 0.0
      %538 = vmatpush2.msra.mxu0 0.0
      %539 = vmatprep.subr.mxu0 0.0
      %540 = vmatpush2.msra.mxu0 0.0
      %541 = vmatprep.subr.mxu0 0.0
      %542 = vmatpush2.msra.mxu0 0.0
      %543 = vmatprep.subr.mxu0 0.0
      %544 = vmatpush2.msra.mxu0 0.0
      %545 = vmatprep.subr.mxu0 0.0
      %546 = vmatpush2.msra.mxu0 0.0
      %547 = vmatprep.mubr.f32.mxu0 0.0
      %548 = vmatmul.mubr.f32.gmra.mxu0 %v436
      %v549 = vpop.f32.mrf.mxu0
      %v550 = vadd.f32 %v433, %v549
      %v551 = vpop.f32.mrf.mxu0
      %552 = vmatprep.mubr.f32.mxu0 0.0
      %553 = vmatmul.mubr.f32.gmra.mxu0 %v439
      %v554 = vpop.f32.mrf.mxu0
      %v555 = vadd.f32 %v433, %v554
      %v556 = vpop.f32.mrf.mxu0
      %557 = vmatprep.mubr.f32.mxu0 0.0
      %558 = vmatmul.mubr.f32.gmra.mxu0 %v442
      %v559 = vpop.f32.mrf.mxu0
      %v560 = vadd.f32 %v433, %v559
      %v561 = vpop.f32.mrf.mxu0
      %562 = vmatprep.mubr.f32.mxu0 0.0
      %563 = vmatmul.mubr.f32.gmra.mxu0 %v445
      %v564 = vpop.f32.mrf.mxu0
      %v565 = vadd.f32 %v433, %v564
      %v566 = vpop.f32.mrf.mxu0
      %567 = vmatprep.mubr.f32.mxu0 0.0
      %568 = vmatmul.mubr.f32.gmra.mxu0 %v448
      %v569 = vpop.f32.mrf.mxu0
      %v570 = vadd.f32 %v433, %v569
      %v571 = vpop.f32.mrf.mxu0
      %572 = vmatprep.mubr.f32.mxu0 0.0
      %573 = vmatmul.mubr.f32.gmra.mxu0 %v451
      %v574 = vpop.f32.mrf.mxu0
      %v575 = vadd.f32 %v433, %v574
      %v576 = vpop.f32.mrf.mxu0
      %577 = vmatprep.mubr.f32.mxu0 0.0
      %578 = vmatmul.mubr.f32.gmra.mxu0 %v454
      %v579 = vpop.f32.mrf.mxu0
      %v580 = vadd.f32 %v433, %v579
      %v581 = vpop.f32.mrf.mxu0
      %582 = vmatprep.mubr.f32.mxu0 0.0
      %583 = vmatmul.mubr.f32.gmra.mxu0 %v457
      %v584 = vpop.f32.mrf.mxu0
      %v585 = vadd.f32 %v433, %v584
      %v586 = vpop.f32.mrf.mxu0
      %587 = vmatprep.mubr.f32.mxu0 0.0
      %588 = vmatmul.mubr.f32.gmra.mxu0 %v460
      %v589 = vpop.f32.mrf.mxu0
      %v590 = vadd.f32 %v433, %v589
      %v591 = vpop.f32.mrf.mxu0
      %592 = vmatprep.mubr.f32.mxu0 0.0
      %593 = vmatmul.mubr.f32.gmra.mxu0 %v463
      %v594 = vpop.f32.mrf.mxu0
      %v595 = vadd.f32 %v433, %v594
      %v596 = vpop.f32.mrf.mxu0
      %597 = vmatprep.mubr.f32.mxu0 0.0
      %598 = vmatmul.mubr.f32.gmra.mxu0 %v466
      %v599 = vpop.f32.mrf.mxu0
      %v600 = vadd.f32 %v433, %v599
      %v601 = vpop.f32.mrf.mxu0
      %602 = vmatprep.mubr.f32.mxu0 0.0
      %603 = vmatmul.mubr.f32.gmra.mxu0 %v469
      %v604 = vpop.f32.mrf.mxu0
      %v605 = vadd.f32 %v433, %v604
      %v606 = vpop.f32.mrf.mxu0
      %607 = vmatprep.mubr.f32.mxu0 0.0
      %608 = vmatmul.mubr.f32.gmra.mxu0 %v472
      %v609 = vpop.f32.mrf.mxu0
      %v610 = vadd.f32 %v433, %v609
      %v611 = vpop.f32.mrf.mxu0
      %612 = vmatprep.mubr.f32.mxu0 0.0
      %613 = vmatmul.mubr.f32.gmra.mxu0 %v475
      %v614 = vpop.f32.mrf.mxu0
      %v615 = vadd.f32 %v433, %v614
      %v616 = vpop.f32.mrf.mxu0
      %617 = vmatprep.mubr.f32.mxu0 0.0
      %618 = vmatmul.mubr.f32.gmra.mxu0 %v478
      %v619 = vpop.f32.mrf.mxu0
      %v620 = vadd.f32 %v433, %v619
      %v621 = vpop.f32.mrf.mxu0
      %622 = vmatprep.mubr.f32.mxu0 0.0
      %623 = vmatmul.mubr.f32.gmra.mxu0 %v481
      %v624 = vpop.f32.mrf.mxu0
      %v625 = vadd.f32 %v433, %v624
      %v626 = vpop.f32.mrf.mxu0
      %627 = vdwg.mxu0
      %v628 = vmax.f32 %v550, 0.0
      %v629 = vmax.f32 %v555, 0.0
      %v630 = vmax.f32 %v560, 0.0
      %v631 = vmax.f32 %v565, 0.0
      %v632 = vmax.f32 %v570, 0.0
      %v633 = vmax.f32 %v575, 0.0
      %v634 = vmax.f32 %v580, 0.0
      %v635 = vmax.f32 %v585, 0.0
      %v636 = vmax.f32 %v590, 0.0
      %v637 = vmax.f32 %v595, 0.0
      %v638 = vmax.f32 %v600, 0.0
      %v639 = vmax.f32 %v605, 0.0
      %v640 = vmax.f32 %v610, 0.0
      %v641 = vmax.f32 %v615, 0.0
      %v642 = vmax.f32 %v620, 0.0
      %v643 = vmax.f32 %v625, 0.0
      %644 = vset.pattern.permute.xlu0 3
      %645 = vperm.xlu0 %644, %v188
      %v646 = vpop.permute.xlu0 %645
      %648 = vset.pattern.permute.xlu0 3
      %649 = vperm.xlu0 %648, %v189
      %v650 = vpop.permute.xlu0 %649
      %652 = vset.pattern.permute.xlu0 3
      %653 = vperm.xlu0 %652, %v190
      %v654 = vpop.permute.xlu0 %653
      %656 = vset.pattern.permute.xlu0 3
      %657 = vperm.xlu0 %656, %v191
      %v658 = vpop.permute.xlu0 %657
      %660 = vset.pattern.permute.xlu0 3
      %661 = vperm.xlu0 %660, %v192
      %v662 = vpop.permute.xlu0 %661
      %664 = vset.pattern.permute.xlu0 3
      %665 = vperm.xlu0 %664, %v193
      %v666 = vpop.permute.xlu0 %665
      %668 = vset.pattern.permute.xlu0 3
      %669 = vperm.xlu0 %668, %v194
      %v670 = vpop.permute.xlu0 %669
      %672 = vset.pattern.permute.xlu0 3
      %673 = vperm.xlu0 %672, %v195
      %v674 = vpop.permute.xlu0 %673
      %676 = vset.pattern.permute.xlu0 3
      %677 = vperm.xlu0 %676, %v196
      %v678 = vpop.permute.xlu0 %677
      %680 = vset.pattern.permute.xlu0 3
      %681 = vperm.xlu0 %680, %v197
      %v682 = vpop.permute.xlu0 %681
      %684 = vset.pattern.permute.xlu0 3
      %685 = vperm.xlu0 %684, %v198
      %v686 = vpop.permute.xlu0 %685
      %688 = vset.pattern.permute.xlu0 3
      %689 = vperm.xlu0 %688, %v199
      %v690 = vpop.permute.xlu0 %689
      %692 = vset.pattern.permute.xlu0 3
      %693 = vperm.xlu0 %692, %v200
      %v694 = vpop.permute.xlu0 %693
      %696 = vset.pattern.permute.xlu0 3
      %697 = vperm.xlu0 %696, %v201
      %v698 = vpop.permute.xlu0 %697
      %700 = vset.pattern.permute.xlu0 3
      %701 = vperm.xlu0 %700, %v202
      %v702 = vpop.permute.xlu0 %701
      %704 = vset.pattern.permute.xlu0 3
      %705 = vperm.xlu0 %704, %v203
      %v706 = vpop.permute.xlu0 %705
      %v708 = vmul.f32 %v628, %v646
      %v709 = vmul.f32 %v629, %v650
      %v710 = vmul.f32 %v630, %v654
      %v711 = vmul.f32 %v631, %v658
      %v712 = vmul.f32 %v632, %v662
      %v713 = vmul.f32 %v633, %v666
      %v714 = vmul.f32 %v634, %v670
      %v715 = vmul.f32 %v635, %v674
      %v716 = vmul.f32 %v636, %v678
      %v717 = vmul.f32 %v637, %v682
      %v718 = vmul.f32 %v638, %v686
      %v719 = vmul.f32 %v639, %v690
      %v720 = vmul.f32 %v640, %v694
      %v721 = vmul.f32 %v641, %v698
      %v722 = vmul.f32 %v642, %v702
      %v723 = vmul.f32 %v643, %v706
      %v724 = vsel %vm434, %v708, -inf
      %v725 = vsel %vm434, %v709, -inf
      %v726 = vsel %vm434, %v710, -inf
      %v727 = vsel %vm434, %v711, -inf
      %v728 = vsel %vm434, %v712, -inf
      %v729 = vmax.f32 %v724, %v728
      %v730 = vsel %vm434, %v713, -inf
      %v731 = vmax.f32 %v725, %v730
      %v732 = vsel %vm434, %v714, -inf
      %v733 = vmax.f32 %v726, %v732
      %v734 = vsel %vm434, %v715, -inf
      %v735 = vmax.f32 %v727, %v734
      %v736 = vsel %vm434, %v716, -inf
      %v737 = vmax.f32 %v729, %v736
      %v738 = vsel %vm434, %v717, -inf
      %v739 = vmax.f32 %v731, %v738
      %v740 = vsel %vm434, %v718, -inf
      %v741 = vmax.f32 %v733, %v740
      %v742 = vsel %vm434, %v719, -inf
      %v743 = vmax.f32 %v735, %v742
      %v744 = vsel %vm434, %v720, -inf
      %v745 = vmax.f32 %v737, %v744
      %v746 = vsel %vm434, %v721, -inf
      %v747 = vmax.f32 %v739, %v746
      %v748 = vsel %vm434, %v722, -inf
      %v749 = vmax.f32 %v741, %v748
      %v750 = vsel %vm434, %v723, -inf
      %v751 = vmax.f32 %v743, %v750
      %v752 = vmax.f32 %v745, %v747
      %v753 = vmax.f32 %v749, %v751
      %v754 = vmax.f32 %v752, %v753
      %v755 = vrot.slane %v754, 4
      %v756 = vmax.f32 %v754, %v755
      %v757 = vrot.slane %v756, 2
      %v758 = vmax.f32 %v756, %v757
      %v759 = vrot.slane %v758, 1
      %v760 = vmax.f32 %v758, %v759
      %761 = vset.pattern.permute.xlu0 4
      %762 = vperm.xlu0 %761, %v188
      %v763 = vpop.permute.xlu0 %762
      %765 = vset.pattern.permute.xlu0 4
      %766 = vperm.xlu0 %765, %v189
      %v767 = vpop.permute.xlu0 %766
      %769 = vset.pattern.permute.xlu0 4
      %770 = vperm.xlu0 %769, %v190
      %v771 = vpop.permute.xlu0 %770
      %773 = vset.pattern.permute.xlu0 4
      %774 = vperm.xlu0 %773, %v191
      %v775 = vpop.permute.xlu0 %774
      %777 = vset.pattern.permute.xlu0 4
      %778 = vperm.xlu0 %777, %v192
      %v779 = vpop.permute.xlu0 %778
      %781 = vset.pattern.permute.xlu0 4
      %782 = vperm.xlu0 %781, %v193
      %v783 = vpop.permute.xlu0 %782
      %785 = vset.pattern.permute.xlu0 4
      %786 = vperm.xlu0 %785, %v194
      %v787 = vpop.permute.xlu0 %786
      %789 = vset.pattern.permute.xlu0 4
      %790 = vperm.xlu0 %789, %v195
      %v791 = vpop.permute.xlu0 %790
      %793 = vset.pattern.permute.xlu0 4
      %794 = vperm.xlu0 %793, %v196
      %v795 = vpop.permute.xlu0 %794
      %797 = vset.pattern.permute.xlu0 4
      %798 = vperm.xlu0 %797, %v197
      %v799 = vpop.permute.xlu0 %798
      %801 = vset.pattern.permute.xlu0 4
      %802 = vperm.xlu0 %801, %v198
      %v803 = vpop.permute.xlu0 %802
      %805 = vset.pattern.permute.xlu0 4
      %806 = vperm.xlu0 %805, %v199
      %v807 = vpop.permute.xlu0 %806
      %809 = vset.pattern.permute.xlu0 4
      %810 = vperm.xlu0 %809, %v200
      %v811 = vpop.permute.xlu0 %810
      %813 = vset.pattern.permute.xlu0 4
      %814 = vperm.xlu0 %813, %v201
      %v815 = vpop.permute.xlu0 %814
      %817 = vset.pattern.permute.xlu0 4
      %818 = vperm.xlu0 %817, %v202
      %v819 = vpop.permute.xlu0 %818
      %821 = vset.pattern.permute.xlu0 4
      %822 = vperm.xlu0 %821, %v203
      %v823 = vpop.permute.xlu0 %822
      %v825 = vmul.f32 %v628, %v763
      %v826 = vmul.f32 %v629, %v767
      %v827 = vmul.f32 %v630, %v771
      %v828 = vmul.f32 %v631, %v775
      %v829 = vmul.f32 %v632, %v779
      %v830 = vmul.f32 %v633, %v783
      %v831 = vmul.f32 %v634, %v787
      %v832 = vmul.f32 %v635, %v791
      %v833 = vmul.f32 %v636, %v795
      %v834 = vmul.f32 %v637, %v799
      %v835 = vmul.f32 %v638, %v803
      %v836 = vmul.f32 %v639, %v807
      %v837 = vmul.f32 %v640, %v811
      %v838 = vmul.f32 %v641, %v815
      %v839 = vmul.f32 %v642, %v819
      %v840 = vmul.f32 %v643, %v823
      %v841 = vsel %vm434, %v825, -inf
      %v842 = vsel %vm434, %v826, -inf
      %v843 = vsel %vm434, %v827, -inf
      %v844 = vsel %vm434, %v828, -inf
      %v845 = vsel %vm434, %v829, -inf
      %v846 = vmax.f32 %v841, %v845
      %v847 = vsel %vm434, %v830, -inf
      %v848 = vmax.f32 %v842, %v847
      %v849 = vsel %vm434, %v831, -inf
      %v850 = vmax.f32 %v843, %v849
      %v851 = vsel %vm434, %v832, -inf
      %v852 = vmax.f32 %v844, %v851
      %v853 = vsel %vm434, %v833, -inf
      %v854 = vmax.f32 %v846, %v853
      %v855 = vsel %vm434, %v834, -inf
      %v856 = vmax.f32 %v848, %v855
      %v857 = vsel %vm434, %v835, -inf
      %v858 = vmax.f32 %v850, %v857
      %v859 = vsel %vm434, %v836, -inf
      %v860 = vmax.f32 %v852, %v859
      %v861 = vsel %vm434, %v837, -inf
      %v862 = vmax.f32 %v854, %v861
      %v863 = vsel %vm434, %v838, -inf
      %v864 = vmax.f32 %v856, %v863
      %v865 = vsel %vm434, %v839, -inf
      %v866 = vmax.f32 %v858, %v865
      %v867 = vsel %vm434, %v840, -inf
      %v868 = vmax.f32 %v860, %v867
      %v869 = vmax.f32 %v862, %v864
      %v870 = vmax.f32 %v866, %v868
      %v871 = vmax.f32 %v869, %v870
      %v872 = vrot.slane %v871, 4
      %v873 = vmax.f32 %v871, %v872
      %v874 = vrot.slane %v873, 2
      %v875 = vmax.f32 %v873, %v874
      %v876 = vrot.slane %v875, 1
      %v877 = vmax.f32 %v875, %v876
      %878 = vset.pattern.permute.xlu0 5
      %879 = vperm.xlu0 %878, %v188
      %v880 = vpop.permute.xlu0 %879
      %882 = vset.pattern.permute.xlu0 5
      %883 = vperm.xlu0 %882, %v189
      %v884 = vpop.permute.xlu0 %883
      %886 = vset.pattern.permute.xlu0 5
      %887 = vperm.xlu0 %886, %v190
      %v888 = vpop.permute.xlu0 %887
      %890 = vset.pattern.permute.xlu0 5
      %891 = vperm.xlu0 %890, %v191
      %v892 = vpop.permute.xlu0 %891
      %894 = vset.pattern.permute.xlu0 5
      %895 = vperm.xlu0 %894, %v192
      %v896 = vpop.permute.xlu0 %895
      %898 = vset.pattern.permute.xlu0 5
      %899 = vperm.xlu0 %898, %v193
      %v900 = vpop.permute.xlu0 %899
      %902 = vset.pattern.permute.xlu0 5
      %903 = vperm.xlu0 %902, %v194
      %v904 = vpop.permute.xlu0 %903
      %906 = vset.pattern.permute.xlu0 5
      %907 = vperm.xlu0 %906, %v195
      %v908 = vpop.permute.xlu0 %907
      %910 = vset.pattern.permute.xlu0 5
      %911 = vperm.xlu0 %910, %v196
      %v912 = vpop.permute.xlu0 %911
      %914 = vset.pattern.permute.xlu0 5
      %915 = vperm.xlu0 %914, %v197
      %v916 = vpop.permute.xlu0 %915
      %918 = vset.pattern.permute.xlu0 5
      %919 = vperm.xlu0 %918, %v198
      %v920 = vpop.permute.xlu0 %919
      %922 = vset.pattern.permute.xlu0 5
      %923 = vperm.xlu0 %922, %v199
      %v924 = vpop.permute.xlu0 %923
      %926 = vset.pattern.permute.xlu0 5
      %927 = vperm.xlu0 %926, %v200
      %v928 = vpop.permute.xlu0 %927
      %930 = vset.pattern.permute.xlu0 5
      %931 = vperm.xlu0 %930, %v201
      %v932 = vpop.permute.xlu0 %931
      %934 = vset.pattern.permute.xlu0 5
      %935 = vperm.xlu0 %934, %v202
      %v936 = vpop.permute.xlu0 %935
      %938 = vset.pattern.permute.xlu0 5
      %939 = vperm.xlu0 %938, %v203
      %v940 = vpop.permute.xlu0 %939
      %v942 = vmul.f32 %v628, %v880
      %v943 = vmul.f32 %v629, %v884
      %v944 = vmul.f32 %v630, %v888
      %v945 = vmul.f32 %v631, %v892
      %v946 = vmul.f32 %v632, %v896
      %v947 = vmul.f32 %v633, %v900
      %v948 = vmul.f32 %v634, %v904
      %v949 = vmul.f32 %v635, %v908
      %v950 = vmul.f32 %v636, %v912
      %v951 = vmul.f32 %v637, %v916
      %v952 = vmul.f32 %v638, %v920
      %v953 = vmul.f32 %v639, %v924
      %v954 = vmul.f32 %v640, %v928
      %v955 = vmul.f32 %v641, %v932
      %v956 = vmul.f32 %v642, %v936
      %v957 = vmul.f32 %v643, %v940
      %v958 = vsel %vm434, %v942, -inf
      %v959 = vsel %vm434, %v943, -inf
      %v960 = vsel %vm434, %v944, -inf
      %v961 = vsel %vm434, %v945, -inf
      %v962 = vsel %vm434, %v946, -inf
      %v963 = vmax.f32 %v958, %v962
      %v964 = vsel %vm434, %v947, -inf
      %v965 = vmax.f32 %v959, %v964
      %v966 = vsel %vm434, %v948, -inf
      %v967 = vmax.f32 %v960, %v966
      %v968 = vsel %vm434, %v949, -inf
      %v969 = vmax.f32 %v961, %v968
      %v970 = vsel %vm434, %v950, -inf
      %v971 = vmax.f32 %v963, %v970
      %v972 = vsel %vm434, %v951, -inf
      %v973 = vmax.f32 %v965, %v972
      %v974 = vsel %vm434, %v952, -inf
      %v975 = vmax.f32 %v967, %v974
      %v976 = vsel %vm434, %v953, -inf
      %v977 = vmax.f32 %v969, %v976
      %v978 = vsel %vm434, %v954, -inf
      %v979 = vmax.f32 %v971, %v978
      %v980 = vsel %vm434, %v955, -inf
      %v981 = vmax.f32 %v973, %v980
      %v982 = vsel %vm434, %v956, -inf
      %v983 = vmax.f32 %v975, %v982
      %v984 = vsel %vm434, %v957, -inf
      %v985 = vmax.f32 %v977, %v984
      %v986 = vmax.f32 %v979, %v981
      %v987 = vmax.f32 %v983, %v985
      %v988 = vmax.f32 %v986, %v987
      %v989 = vrot.slane %v988, 4
      %v990 = vmax.f32 %v988, %v989
      %v991 = vrot.slane %v990, 2
      %v992 = vmax.f32 %v990, %v991
      %v993 = vrot.slane %v992, 1
      %v994 = vmax.f32 %v992, %v993
      %995 = vset.pattern.permute.xlu0 6
      %996 = vperm.xlu0 %995, %v188
      %v997 = vpop.permute.xlu0 %996
      %999 = vset.pattern.permute.xlu0 6
      %1000 = vperm.xlu0 %999, %v189
      %v1001 = vpop.permute.xlu0 %1000
      %1003 = vset.pattern.permute.xlu0 6
      %1004 = vperm.xlu0 %1003, %v190
      %v1005 = vpop.permute.xlu0 %1004
      %1007 = vset.pattern.permute.xlu0 6
      %1008 = vperm.xlu0 %1007, %v191
      %v1009 = vpop.permute.xlu0 %1008
      %1011 = vset.pattern.permute.xlu0 6
      %1012 = vperm.xlu0 %1011, %v192
      %v1013 = vpop.permute.xlu0 %1012
      %1015 = vset.pattern.permute.xlu0 6
      %1016 = vperm.xlu0 %1015, %v193
      %v1017 = vpop.permute.xlu0 %1016
      %1019 = vset.pattern.permute.xlu0 6
      %1020 = vperm.xlu0 %1019, %v194
      %v1021 = vpop.permute.xlu0 %1020
      %1023 = vset.pattern.permute.xlu0 6
      %1024 = vperm.xlu0 %1023, %v195
      %v1025 = vpop.permute.xlu0 %1024
      %1027 = vset.pattern.permute.xlu0 6
      %1028 = vperm.xlu0 %1027, %v196
      %v1029 = vpop.permute.xlu0 %1028
      %1031 = vset.pattern.permute.xlu0 6
      %1032 = vperm.xlu0 %1031, %v197
      %v1033 = vpop.permute.xlu0 %1032
      %1035 = vset.pattern.permute.xlu0 6
      %1036 = vperm.xlu0 %1035, %v198
      %v1037 = vpop.permute.xlu0 %1036
      %1039 = vset.pattern.permute.xlu0 6
      %1040 = vperm.xlu0 %1039, %v199
      %v1041 = vpop.permute.xlu0 %1040
      %1043 = vset.pattern.permute.xlu0 6
      %1044 = vperm.xlu0 %1043, %v200
      %v1045 = vpop.permute.xlu0 %1044
      %1047 = vset.pattern.permute.xlu0 6
      %1048 = vperm.xlu0 %1047, %v201
      %v1049 = vpop.permute.xlu0 %1048
      %1051 = vset.pattern.permute.xlu0 6
      %1052 = vperm.xlu0 %1051, %v202
      %v1053 = vpop.permute.xlu0 %1052
      %1055 = vset.pattern.permute.xlu0 6
      %1056 = vperm.xlu0 %1055, %v203
      %v1057 = vpop.permute.xlu0 %1056
      %v1059 = vmul.f32 %v628, %v997
      %v1060 = vmul.f32 %v629, %v1001
      %v1061 = vmul.f32 %v630, %v1005
      %v1062 = vmul.f32 %v631, %v1009
      %v1063 = vmul.f32 %v632, %v1013
      %v1064 = vmul.f32 %v633, %v1017
      %v1065 = vmul.f32 %v634, %v1021
      %v1066 = vmul.f32 %v635, %v1025
      %v1067 = vmul.f32 %v636, %v1029
      %v1068 = vmul.f32 %v637, %v1033
      %v1069 = vmul.f32 %v638, %v1037
      %v1070 = vmul.f32 %v639, %v1041
      %v1071 = vmul.f32 %v640, %v1045
      %v1072 = vmul.f32 %v641, %v1049
      %v1073 = vmul.f32 %v642, %v1053
      %v1074 = vmul.f32 %v643, %v1057
      %v1075 = vsel %vm434, %v1059, -inf
      %v1076 = vsel %vm434, %v1060, -inf
      %v1077 = vsel %vm434, %v1061, -inf
      %v1078 = vsel %vm434, %v1062, -inf
      %v1079 = vsel %vm434, %v1063, -inf
      %v1080 = vmax.f32 %v1075, %v1079
      %v1081 = vsel %vm434, %v1064, -inf
      %v1082 = vmax.f32 %v1076, %v1081
      %v1083 = vsel %vm434, %v1065, -inf
      %v1084 = vmax.f32 %v1077, %v1083
      %v1085 = vsel %vm434, %v1066, -inf
      %v1086 = vmax.f32 %v1078, %v1085
      %v1087 = vsel %vm434, %v1067, -inf
      %v1088 = vmax.f32 %v1080, %v1087
      %v1089 = vsel %vm434, %v1068, -inf
      %v1090 = vmax.f32 %v1082, %v1089
      %v1091 = vsel %vm434, %v1069, -inf
      %v1092 = vmax.f32 %v1084, %v1091
      %v1093 = vsel %vm434, %v1070, -inf
      %v1094 = vmax.f32 %v1086, %v1093
      %v1095 = vsel %vm434, %v1071, -inf
      %v1096 = vmax.f32 %v1088, %v1095
      %v1097 = vsel %vm434, %v1072, -inf
      %v1098 = vmax.f32 %v1090, %v1097
      %v1099 = vsel %vm434, %v1073, -inf
      %v1100 = vmax.f32 %v1092, %v1099
      %v1101 = vsel %vm434, %v1074, -inf
      %v1102 = vmax.f32 %v1094, %v1101
      %v1103 = vmax.f32 %v1096, %v1098
      %v1104 = vmax.f32 %v1100, %v1102
      %v1105 = vmax.f32 %v1103, %v1104
      %v1106 = vrot.slane %v1105, 4
      %v1107 = vmax.f32 %v1105, %v1106
      %v1108 = vrot.slane %v1107, 2
      %v1109 = vmax.f32 %v1107, %v1108
      %v1110 = vrot.slane %v1109, 1
      %v1111 = vmax.f32 %v1109, %v1110
      %vm1112 = vcmask 1040384
      %v1113 = vsel %vm1112, %v760, %v877
      %vm1114 = vcmask 1041408
      %v1115 = vsel %vm1114, %v1113, %v994
      %vm1116 = vcmask 1042432
      %v1117 = vsel %vm1116, %v1115, %v1111
      %v1118 = vld [vmem:[%s2 + $0x38] sm:$0xff]
      %v1119 = vld [vmem:[%s2 + $0x40] sm:$0xff]
      %v1120 = vld [vmem:[%s2 + $0x48] sm:$0xff]
      %v1121 = vld [vmem:[%s2 + $0x50] sm:$0xff]
      %v1122 = vld [vmem:[%s2 + $0x58] sm:$0x1]
      %v1123 = vlaneseq
      %v1124 = vshrl.u32 %v1123, 7
      %v1125 = vsub.s32 0, %v1124
      %v1126 = vrot.slane %v1122, %v1125
      %v1128 = vsel %vm434, %v1117, 0
      %1130 = vmatprep.subr.mxu0 0.0
      %1131 = vmatpush1.msra.mxu0 0.0
      %1132 = vmatprep.subr.mxu0 0.0
      %1133 = vmatpush1.msra.mxu0 0.0
      %1134 = vmatprep.subr.mxu0 0.0
      %1135 = vmatpush1.msra.mxu0 0.0
      %1136 = vmatprep.subr.mxu0 0.0
      %1137 = vmatpush1.msra.mxu0 0.0
      %1138 = vmatprep.subr.mxu0 0.0
      %1139 = vmatpush1.msra.mxu0 0.0
      %1140 = vmatprep.subr.mxu0 0.0
      %1141 = vmatpush1.msra.mxu0 0.0
      %1142 = vmatprep.subr.mxu0 0.0
      %1143 = vmatpush1.msra.mxu0 0.0
      %1144 = vmatprep.subr.mxu0 0.0
      %1145 = vmatpush1.msra.mxu0 0.0
      %1146 = vmatprep.subr.mxu0 0.0
      %1147 = vmatpush1.msra.mxu0 0.0
      %1148 = vmatprep.subr.mxu0 0.0
      %1149 = vmatpush1.msra.mxu0 0.0
      %1150 = vmatprep.subr.mxu0 0.0
      %1151 = vmatpush1.msra.mxu0 0.0
      %1152 = vmatprep.subr.mxu0 0.0
      %1153 = vmatpush1.msra.mxu0 0.0
      %1154 = vmatprep.subr.mxu0 0.0
      %1155 = vmatpush1.msra.mxu0 %v1121
      %1156 = vmatprep.subr.mxu0 0.0
      %1157 = vmatpush1.msra.mxu0 %v1120
      %1158 = vmatprep.subr.mxu0 0.0
      %1159 = vmatpush1.msra.mxu0 %v1119
      %1160 = vmatprep.subr.mxu0 0.0
      %1161 = vmatpush1.msra.mxu0 %v1118
      %1162 = vmatprep.subr.mxu0 0.0
      %1163 = vmatpush2.msra.mxu0 0.0
      %1164 = vmatprep.subr.mxu0 0.0
      %1165 = vmatpush2.msra.mxu0 0.0
      %1166 = vmatprep.subr.mxu0 0.0
      %1167 = vmatpush2.msra.mxu0 0.0
      %1168 = vmatprep.subr.mxu0 0.0
      %1169 = vmatpush2.msra.mxu0 0.0
      %1170 = vmatprep.subr.mxu0 0.0
      %1171 = vmatpush2.msra.mxu0 0.0
      %1172 = vmatprep.subr.mxu0 0.0
      %1173 = vmatpush2.msra.mxu0 0.0
      %1174 = vmatprep.subr.mxu0 0.0
      %1175 = vmatpush2.msra.mxu0 0.0
      %1176 = vmatprep.subr.mxu0 0.0
      %1177 = vmatpush2.msra.mxu0 0.0
      %1178 = vmatprep.subr.mxu0 0.0
      %1179 = vmatpush2.msra.mxu0 0.0
      %1180 = vmatprep.subr.mxu0 0.0
      %1181 = vmatpush2.msra.mxu0 0.0
      %1182 = vmatprep.subr.mxu0 0.0
      %1183 = vmatpush2.msra.mxu0 0.0
      %1184 = vmatprep.subr.mxu0 0.0
      %1185 = vmatpush2.msra.mxu0 0.0
      %1186 = vmatprep.subr.mxu0 0.0
      %1187 = vmatpush2.msra.mxu0 0.0
      %1188 = vmatprep.subr.mxu0 0.0
      %1189 = vmatpush2.msra.mxu0 0.0
      %1190 = vmatprep.subr.mxu0 0.0
      %1191 = vmatpush2.msra.mxu0 0.0
      %1192 = vmatprep.subr.mxu0 0.0
      %1193 = vmatpush2.msra.mxu0 0.0
      %1194 = vmatprep.mubr.f32.mxu0 0.0
      %1195 = vmatmul.mubr.f32.gmra.mxu0 %v1128
      %v1196 = vpop.f32.mrf.mxu0
      %v1197 = vadd.f32 %v1126, %v1196
      %v1198 = vpop.f32.mrf.mxu0
      %1199 = vdwg.mxu0
      %v1200 = vmul.f32 %v1197, 0.5
      %v1201 = vmul.f32 %v1200, 1.442695
      %v1202 = vpow.pop %v1201
      %1204 = vrot.lane.b32.xlu0 %v204, 8
      %v1205 = vpop.permute.xlu0 %1204
      %v1207 = vmul.f32 %v1202, %v1205
      %1209 = vrot.lane.b32.xlu0 %v1207, 120
      %v1210 = vpop.permute.xlu0 %1209
      %v1212 = vadd.f32 %v1197, %v1210
      %v1213 = vld [vmem:[%s2 + $0x60] sm:$0xff]
      %v1214 = vld [vmem:[%s2 + $0x68] sm:$0x1]
      %v1215 = vlaneseq
      %v1216 = vshrl.u32 %v1215, 7
      %v1217 = vsub.s32 0, %v1216
      %v1218 = vrot.slane %v1214, %v1217
      %vm1219 = vcmask 64512
      %v1221 = vsel %vm1219, %v1212, 0
      %1223 = vmatprep.subr.mxu0 0.0
      %1224 = vmatpush1.msra.mxu0 0.0
      %1225 = vmatprep.subr.mxu0 0.0
      %1226 = vmatpush1.msra.mxu0 0.0
      %1227 = vmatprep.subr.mxu0 0.0
      %1228 = vmatpush1.msra.mxu0 0.0
      %1229 = vmatprep.subr.mxu0 0.0
      %1230 = vmatpush1.msra.mxu0 0.0
      %1231 = vmatprep.subr.mxu0 0.0
      %1232 = vmatpush1.msra.mxu0 0.0
      %1233 = vmatprep.subr.mxu0 0.0
      %1234 = vmatpush1.msra.mxu0 0.0
      %1235 = vmatprep.subr.mxu0 0.0
      %1236 = vmatpush1.msra.mxu0 0.0
      %1237 = vmatprep.subr.mxu0 0.0
      %1238 = vmatpush1.msra.mxu0 0.0
      %1239 = vmatprep.subr.mxu0 0.0
      %1240 = vmatpush1.msra.mxu0 0.0
      %1241 = vmatprep.subr.mxu0 0.0
      %1242 = vmatpush1.msra.mxu0 0.0
      %1243 = vmatprep.subr.mxu0 0.0
      %1244 = vmatpush1.msra.mxu0 0.0
      %1245 = vmatprep.subr.mxu0 0.0
      %1246 = vmatpush1.msra.mxu0 0.0
      %1247 = vmatprep.subr.mxu0 0.0
      %1248 = vmatpush1.msra.mxu0 0.0
      %1249 = vmatprep.subr.mxu0 0.0
      %1250 = vmatpush1.msra.mxu0 0.0
      %1251 = vmatprep.subr.mxu0 0.0
      %1252 = vmatpush1.msra.mxu0 0.0
      %1253 = vmatprep.subr.mxu0 0.0
      %1254 = vmatpush1.msra.mxu0 %v1213
      %1255 = vmatprep.subr.mxu0 0.0
      %1256 = vmatpush2.msra.mxu0 0.0
      %1257 = vmatprep.subr.mxu0 0.0
      %1258 = vmatpush2.msra.mxu0 0.0
      %1259 = vmatprep.subr.mxu0 0.0
      %1260 = vmatpush2.msra.mxu0 0.0
      %1261 = vmatprep.subr.mxu0 0.0
      %1262 = vmatpush2.msra.mxu0 0.0
      %1263 = vmatprep.subr.mxu0 0.0
      %1264 = vmatpush2.msra.mxu0 0.0
      %1265 = vmatprep.subr.mxu0 0.0
      %1266 = vmatpush2.msra.mxu0 0.0
      %1267 = vmatprep.subr.mxu0 0.0
      %1268 = vmatpush2.msra.mxu0 0.0
      %1269 = vmatprep.subr.mxu0 0.0
      %1270 = vmatpush2.msra.mxu0 0.0
      %1271 = vmatprep.subr.mxu0 0.0
      %1272 = vmatpush2.msra.mxu0 0.0
      %1273 = vmatprep.subr.mxu0 0.0
      %1274 = vmatpush2.msra.mxu0 0.0
      %1275 = vmatprep.subr.mxu0 0.0
      %1276 = vmatpush2.msra.mxu0 0.0
      %1277 = vmatprep.subr.mxu0 0.0
      %1278 = vmatpush2.msra.mxu0 0.0
      %1279 = vmatprep.subr.mxu0 0.0
      %1280 = vmatpush2.msra.mxu0 0.0
      %1281 = vmatprep.subr.mxu0 0.0
      %1282 = vmatpush2.msra.mxu0 0.0
      %1283 = vmatprep.subr.mxu0 0.0
      %1284 = vmatpush2.msra.mxu0 0.0
      %1285 = vmatprep.subr.mxu0 0.0
      %1286 = vmatpush2.msra.mxu0 0.0
      %1287 = vmatprep.mubr.f32.mxu0 0.0
      %1288 = vmatmul.mubr.f32.gmra.mxu0 %v1221
      %v1289 = vpop.f32.mrf.mxu0
      %v1290 = vadd.f32 %v1218, %v1289
      %v1291 = vpop.f32.mrf.mxu0
      %1292 = vdwg.mxu0
      %1294 = vrot.lane.b32.xlu0 %v1197, 120
      %v1295 = vpop.permute.xlu0 %1294
      %vm1297 = vcmask 60416
      %v1298 = vsel %vm1297, %v1295, 0.0
      %1299 = vadd.xlane.f32.xlu0 %v1298
      %v1300 = vpop.xlane.xlu0 %1299
      %v1301 = vmul.f32 %v1300, 0.5
      %v1302 = vadd.f32 %v1301, 11.351508
      %vm1303 = vcmask 1043456
      %v1304 = vsel %vm1303, %v1302, 0.0
      %v1305 = vrot.slane %v1304, 4
      %v1306 = vadd.f32 %v1304, %v1305
      %v1307 = vrot.slane %v1306, 2
      %v1308 = vadd.f32 %v1306, %v1307
      %v1309 = vrot.slane %v1308, 1
      %v1310 = vadd.f32 %v1308, %v1309
      %v1311 = vld [vmem:[%s2 + $0x70] sm:$0xf]
      %v1312 = vld [vmem:[%s2 + $0x78] sm:$0xf]
      %v1313 = vmul.f32 %v1311, 1.442695
      %v1314 = vpow.pop %v1313
      %v1315 = vmul.f32 %v1212, %v1314
      %v1316 = vadd.f32 %v1315, %v1312
      %v1317 = vmul.f32 %v1316, 0.5
      %v1318 = vmul.f32 %v1317, %v1316
      %v1319 = vsub.f32 -0.9189385, %v1318
      %v1320 = vsel %vm1297, %v1319, 0.0
      %1321 = vadd.xlane.f32.xlu0 %v1320
      %v1322 = vpop.xlane.xlu0 %1321
      %v1323 = vsel %vm1297, %v1311, 0.0
      %1324 = vadd.xlane.f32.xlu0 %v1323
      %v1325 = vpop.xlane.xlu0 %1324
      %v1326 = vsub.f32 0.0, %v1325
      %v1327 = vmul.f32 %v1326, %v204
      %v1328 = vsub.f32 %v1322, %v1327
      %vm1329 = vcmask 68672
      %v1330 = vsel %vm1329, %v1328, 0.0
      %v1331 = vrot.slane %v1330, 4
      %v1332 = vadd.f32 %v1330, %v1331
      %v1333 = vrot.slane %v1332, 2
      %v1334 = vadd.f32 %v1332, %v1333
      %v1335 = vrot.slane %v1334, 1
      %v1336 = vadd.f32 %v1334, %v1335
      %v1337 = vmul.f32 %v1290, 1.442695
      %v1338 = vpow.pop %v1337
      %1340 = vrot.lane.b32.xlu0 %v1290, 8
      %v1341 = vpop.permute.xlu0 %1340
      %1344 = vrot.lane.b32.xlu0 %v1338, 8
      %v1345 = vpop.permute.xlu0 %1344
      %v1347 = vsel %vm1219, %v1212, %v1341
      %vm1348 = vcmask 89088
      %v1349 = vsel %vm1348, %v1347, %v1345
      %v1351 = vrot.slane %v1349, 1
      %1352 = vrot.lane.b32.xlu0 %v1351, 14
      %v1353 = vpop.permute.xlu0 %1352
      %v1355 = vrot.slane %v1349, 2
      %1356 = vrot.lane.b32.xlu0 %v1355, 28
      %v1357 = vpop.permute.xlu0 %1356
      %v1359 = vrot.slane %v1349, 3
      %1360 = vrot.lane.b32.xlu0 %v1359, 42
      %v1361 = vpop.permute.xlu0 %1360
      %vm1363 = vcmask 113664
      %v1364 = vsel %vm1363, %v1349, %v1353
      %vm1365 = vcmask 228352
      %v1366 = vsel %vm1365, %v1364, %v1357
      %vm1367 = vcmask 343040
      %v1368 = vsel %vm1367, %v1366, %v1361
      %v1369 = vld [vmem:[%s2 + $0x80] sm:$0xff]
      %v1370 = vld [vmem:[%s2 + $0x88] sm:$0xff]
      %v1371 = vld [vmem:[%s2 + $0x90] sm:$0xff]
      %v1372 = vld [vmem:[%s2 + $0x98] sm:$0xff]
      %v1373 = vld [vmem:[%s2 + $0xa0] sm:$0xff]
      %v1374 = vld [vmem:[%s2 + $0xa8] sm:$0xff]
      %v1375 = vld [vmem:[%s2 + $0xb0] sm:$0xff]
      %v1376 = vld [vmem:[%s2 + $0xb8] sm:$0x1]
      %vm1377 = vcmask 457728
      %v1379 = vsel %vm1377, %v1368, 0
      %1381 = vmatprep.subr.mxu0 0.0
      %1382 = vmatpush1.msra.mxu0 0.0
      %1383 = vmatprep.subr.mxu0 0.0
      %1384 = vmatpush1.msra.mxu0 0.0
      %1385 = vmatprep.subr.mxu0 0.0
      %1386 = vmatpush1.msra.mxu0 0.0
      %1387 = vmatprep.subr.mxu0 0.0
      %1388 = vmatpush1.msra.mxu0 0.0
      %1389 = vmatprep.subr.mxu0 0.0
      %1390 = vmatpush1.msra.mxu0 0.0
      %1391 = vmatprep.subr.mxu0 0.0
      %1392 = vmatpush1.msra.mxu0 0.0
      %1393 = vmatprep.subr.mxu0 0.0
      %1394 = vmatpush1.msra.mxu0 0.0
      %1395 = vmatprep.subr.mxu0 0.0
      %1396 = vmatpush1.msra.mxu0 0.0
      %1397 = vmatprep.subr.mxu0 0.0
      %1398 = vmatpush1.msra.mxu0 0.0
      %1399 = vmatprep.subr.mxu0 0.0
      %1400 = vmatpush1.msra.mxu0 %v1375
      %1401 = vmatprep.subr.mxu0 0.0
      %1402 = vmatpush1.msra.mxu0 %v1374
      %1403 = vmatprep.subr.mxu0 0.0
      %1404 = vmatpush1.msra.mxu0 %v1373
      %1405 = vmatprep.subr.mxu0 0.0
      %1406 = vmatpush1.msra.mxu0 %v1372
      %1407 = vmatprep.subr.mxu0 0.0
      %1408 = vmatpush1.msra.mxu0 %v1371
      %1409 = vmatprep.subr.mxu0 0.0
      %1410 = vmatpush1.msra.mxu0 %v1370
      %1411 = vmatprep.subr.mxu0 0.0
      %1412 = vmatpush1.msra.mxu0 %v1369
      %1413 = vmatprep.subr.mxu0 0.0
      %1414 = vmatpush2.msra.mxu0 0.0
      %1415 = vmatprep.subr.mxu0 0.0
      %1416 = vmatpush2.msra.mxu0 0.0
      %1417 = vmatprep.subr.mxu0 0.0
      %1418 = vmatpush2.msra.mxu0 0.0
      %1419 = vmatprep.subr.mxu0 0.0
      %1420 = vmatpush2.msra.mxu0 0.0
      %1421 = vmatprep.subr.mxu0 0.0
      %1422 = vmatpush2.msra.mxu0 0.0
      %1423 = vmatprep.subr.mxu0 0.0
      %1424 = vmatpush2.msra.mxu0 0.0
      %1425 = vmatprep.subr.mxu0 0.0
      %1426 = vmatpush2.msra.mxu0 0.0
      %1427 = vmatprep.subr.mxu0 0.0
      %1428 = vmatpush2.msra.mxu0 0.0
      %1429 = vmatprep.subr.mxu0 0.0
      %1430 = vmatpush2.msra.mxu0 0.0
      %1431 = vmatprep.subr.mxu0 0.0
      %1432 = vmatpush2.msra.mxu0 0.0
      %1433 = vmatprep.subr.mxu0 0.0
      %1434 = vmatpush2.msra.mxu0 0.0
      %1435 = vmatprep.subr.mxu0 0.0
      %1436 = vmatpush2.msra.mxu0 0.0
      %1437 = vmatprep.subr.mxu0 0.0
      %1438 = vmatpush2.msra.mxu0 0.0
      %1439 = vmatprep.subr.mxu0 0.0
      %1440 = vmatpush2.msra.mxu0 0.0
      %1441 = vmatprep.subr.mxu0 0.0
      %1442 = vmatpush2.msra.mxu0 0.0
      %1443 = vmatprep.subr.mxu0 0.0
      %1444 = vmatpush2.msra.mxu0 0.0
      %1445 = vmatprep.mubr.f32.mxu0 0.0
      %1446 = vmatmul.mubr.f32.gmra.mxu0 %v1379
      %v1447 = vpop.f32.mrf.mxu0
      %v1448 = vadd.f32 %v1376, %v1447
      %v1449 = vpop.f32.mrf.mxu0
      %1450 = vdwg.mxu0
      %v1451 = vtanh.pop %v1448
      %v1452 = vld [vmem:[%s2 + $0xc0] sm:$0xff]
      %v1453 = vld [vmem:[%s2 + $0xc8] sm:$0xff]
      %v1454 = vld [vmem:[%s2 + $0xd0] sm:$0xff]
      %v1455 = vld [vmem:[%s2 + $0xd8] sm:$0xff]
      %v1456 = vld [vmem:[%s2 + $0xe0] sm:$0x1]
      %v1458 = vsel %vm434, %v1451, 0
      %1460 = vmatprep.subr.mxu0 0.0
      %1461 = vmatpush1.msra.mxu0 0.0
      %1462 = vmatprep.subr.mxu0 0.0
      %1463 = vmatpush1.msra.mxu0 0.0
      %1464 = vmatprep.subr.mxu0 0.0
      %1465 = vmatpush1.msra.mxu0 0.0
      %1466 = vmatprep.subr.mxu0 0.0
      %1467 = vmatpush1.msra.mxu0 0.0
      %1468 = vmatprep.subr.mxu0 0.0
      %1469 = vmatpush1.msra.mxu0 0.0
      %1470 = vmatprep.subr.mxu0 0.0
      %1471 = vmatpush1.msra.mxu0 0.0
      %1472 = vmatprep.subr.mxu0 0.0
      %1473 = vmatpush1.msra.mxu0 0.0
      %1474 = vmatprep.subr.mxu0 0.0
      %1475 = vmatpush1.msra.mxu0 0.0
      %1476 = vmatprep.subr.mxu0 0.0
      %1477 = vmatpush1.msra.mxu0 0.0
      %1478 = vmatprep.subr.mxu0 0.0
      %1479 = vmatpush1.msra.mxu0 0.0
      %1480 = vmatprep.subr.mxu0 0.0
      %1481 = vmatpush1.msra.mxu0 0.0
      %1482 = vmatprep.subr.mxu0 0.0
      %1483 = vmatpush1.msra.mxu0 0.0
      %1484 = vmatprep.subr.mxu0 0.0
      %1485 = vmatpush1.msra.mxu0 %v1455
      %1486 = vmatprep.subr.mxu0 0.0
      %1487 = vmatpush1.msra.mxu0 %v1454
      %1488 = vmatprep.subr.mxu0 0.0
      %1489 = vmatpush1.msra.mxu0 %v1453
      %1490 = vmatprep.subr.mxu0 0.0
      %1491 = vmatpush1.msra.mxu0 %v1452
      %1492 = vmatprep.subr.mxu0 0.0
      %1493 = vmatpush2.msra.mxu0 0.0
      %1494 = vmatprep.subr.mxu0 0.0
      %1495 = vmatpush2.msra.mxu0 0.0
      %1496 = vmatprep.subr.mxu0 0.0
      %1497 = vmatpush2.msra.mxu0 0.0
      %1498 = vmatprep.subr.mxu0 0.0
      %1499 = vmatpush2.msra.mxu0 0.0
      %1500 = vmatprep.subr.mxu0 0.0
      %1501 = vmatpush2.msra.mxu0 0.0
      %1502 = vmatprep.subr.mxu0 0.0
      %1503 = vmatpush2.msra.mxu0 0.0
      %1504 = vmatprep.subr.mxu0 0.0
      %1505 = vmatpush2.msra.mxu0 0.0
      %1506 = vmatprep.subr.mxu0 0.0
      %1507 = vmatpush2.msra.mxu0 0.0
      %1508 = vmatprep.subr.mxu0 0.0
      %1509 = vmatpush2.msra.mxu0 0.0
      %1510 = vmatprep.subr.mxu0 0.0
      %1511 = vmatpush2.msra.mxu0 0.0
      %1512 = vmatprep.subr.mxu0 0.0
      %1513 = vmatpush2.msra.mxu0 0.0
      %1514 = vmatprep.subr.mxu0 0.0
      %1515 = vmatpush2.msra.mxu0 0.0
      %1516 = vmatprep.subr.mxu0 0.0
      %1517 = vmatpush2.msra.mxu0 0.0
      %1518 = vmatprep.subr.mxu0 0.0
      %1519 = vmatpush2.msra.mxu0 0.0
      %1520 = vmatprep.subr.mxu0 0.0
      %1521 = vmatpush2.msra.mxu0 0.0
      %1522 = vmatprep.subr.mxu0 0.0
      %1523 = vmatpush2.msra.mxu0 0.0
      %1524 = vmatprep.mubr.f32.mxu0 0.0
      %1525 = vmatmul.mubr.f32.gmra.mxu0 %v1458
      %v1526 = vpop.f32.mrf.mxu0
      %v1527 = vadd.f32 %v1456, %v1526
      %v1528 = vpop.f32.mrf.mxu0
      %1529 = vdwg.mxu0
      %1530 = vrot.lane.b32.xlu0 %v188, 125
      %v1531 = vpop.permute.xlu0 %1530
      %1532 = vrot.lane.b32.xlu0 %v189, 125
      %v1533 = vpop.permute.xlu0 %1532
      %1534 = vrot.lane.b32.xlu0 %v190, 125
      %v1535 = vpop.permute.xlu0 %1534
      %1536 = vrot.lane.b32.xlu0 %v191, 125
      %v1537 = vpop.permute.xlu0 %1536
      %1538 = vrot.lane.b32.xlu0 %v192, 125
      %v1539 = vpop.permute.xlu0 %1538
      %1540 = vrot.lane.b32.xlu0 %v193, 125
      %v1541 = vpop.permute.xlu0 %1540
      %1542 = vrot.lane.b32.xlu0 %v194, 125
      %v1543 = vpop.permute.xlu0 %1542
      %1544 = vrot.lane.b32.xlu0 %v195, 125
      %v1545 = vpop.permute.xlu0 %1544
      %1546 = vrot.lane.b32.xlu0 %v196, 125
      %v1547 = vpop.permute.xlu0 %1546
      %1548 = vrot.lane.b32.xlu0 %v197, 125
      %v1549 = vpop.permute.xlu0 %1548
      %1550 = vrot.lane.b32.xlu0 %v198, 125
      %v1551 = vpop.permute.xlu0 %1550
      %1552 = vrot.lane.b32.xlu0 %v199, 125
      %v1553 = vpop.permute.xlu0 %1552
      %1554 = vrot.lane.b32.xlu0 %v200, 125
      %v1555 = vpop.permute.xlu0 %1554
      %1556 = vrot.lane.b32.xlu0 %v201, 125
      %v1557 = vpop.permute.xlu0 %1556
      %1558 = vrot.lane.b32.xlu0 %v202, 125
      %v1559 = vpop.permute.xlu0 %1558
      %1560 = vrot.lane.b32.xlu0 %v203, 125
      %v1561 = vpop.permute.xlu0 %1560
      %vm1562 = vcmask 31744
      %v1563 = vsel %vm1562, %v1531, 0
      %v1565 = vsel %vm1562, %v1533, 0
      %v1567 = vsel %vm1562, %v1535, 0
      %v1569 = vsel %vm1562, %v1537, 0
      %v1571 = vsel %vm1562, %v1539, 0
      %v1573 = vsel %vm1562, %v1541, 0
      %v1575 = vsel %vm1562, %v1543, 0
      %v1577 = vsel %vm1562, %v1545, 0
      %v1579 = vsel %vm1562, %v1547, 0
      %v1581 = vsel %vm1562, %v1549, 0
      %v1583 = vsel %vm1562, %v1551, 0
      %v1585 = vsel %vm1562, %v1553, 0
      %v1587 = vsel %vm1562, %v1555, 0
      %v1589 = vsel %vm1562, %v1557, 0
      %v1591 = vsel %vm1562, %v1559, 0
      %v1593 = vsel %vm1562, %v1561, 0
      %v1595 = vsel %vm1303, %v1290, 0
      %1597 = vmatprep.subr.mxu0 0.0
      %1598 = vmatpush1.msra.mxu0 0.0
      %1599 = vmatprep.subr.mxu0 0.0
      %1600 = vmatpush1.msra.mxu0 0.0
      %1601 = vmatprep.subr.mxu0 0.0
      %1602 = vmatpush1.msra.mxu0 0.0
      %1603 = vmatprep.subr.mxu0 0.0
      %1604 = vmatpush1.msra.mxu0 0.0
      %1605 = vmatprep.subr.mxu0 0.0
      %1606 = vmatpush1.msra.mxu0 0.0
      %1607 = vmatprep.subr.mxu0 0.0
      %1608 = vmatpush1.msra.mxu0 0.0
      %1609 = vmatprep.subr.mxu0 0.0
      %1610 = vmatpush1.msra.mxu0 0.0
      %1611 = vmatprep.subr.mxu0 0.0
      %1612 = vmatpush1.msra.mxu0 0.0
      %1613 = vmatprep.subr.mxu0 0.0
      %1614 = vmatpush1.msra.mxu0 0.0
      %1615 = vmatprep.subr.mxu0 0.0
      %1616 = vmatpush1.msra.mxu0 0.0
      %1617 = vmatprep.subr.mxu0 0.0
      %1618 = vmatpush1.msra.mxu0 0.0
      %1619 = vmatprep.subr.mxu0 0.0
      %1620 = vmatpush1.msra.mxu0 0.0
      %1621 = vmatprep.subr.mxu0 0.0
      %1622 = vmatpush1.msra.mxu0 0.0
      %1623 = vmatprep.subr.mxu0 0.0
      %1624 = vmatpush1.msra.mxu0 0.0
      %1625 = vmatprep.subr.mxu0 0.0
      %1626 = vmatpush1.msra.mxu0 0.0
      %1627 = vmatprep.subr.mxu0 0.0
      %1628 = vmatpush1.msra.mxu0 %v1595
      %1629 = vmatprep.subr.mxu0 0.0
      %1630 = vmatpush2.msra.mxu0 0.0
      %1631 = vmatprep.subr.mxu0 0.0
      %1632 = vmatpush2.msra.mxu0 0.0
      %1633 = vmatprep.subr.mxu0 0.0
      %1634 = vmatpush2.msra.mxu0 0.0
      %1635 = vmatprep.subr.mxu0 0.0
      %1636 = vmatpush2.msra.mxu0 0.0
      %1637 = vmatprep.subr.mxu0 0.0
      %1638 = vmatpush2.msra.mxu0 0.0
      %1639 = vmatprep.subr.mxu0 0.0
      %1640 = vmatpush2.msra.mxu0 0.0
      %1641 = vmatprep.subr.mxu0 0.0
      %1642 = vmatpush2.msra.mxu0 0.0
      %1643 = vmatprep.subr.mxu0 0.0
      %1644 = vmatpush2.msra.mxu0 0.0
      %1645 = vmatprep.subr.mxu0 0.0
      %1646 = vmatpush2.msra.mxu0 0.0
      %1647 = vmatprep.subr.mxu0 0.0
      %1648 = vmatpush2.msra.mxu0 0.0
      %1649 = vmatprep.subr.mxu0 0.0
      %1650 = vmatpush2.msra.mxu0 0.0
      %1651 = vmatprep.subr.mxu0 0.0
      %1652 = vmatpush2.msra.mxu0 0.0
      %1653 = vmatprep.subr.mxu0 0.0
      %1654 = vmatpush2.msra.mxu0 0.0
      %1655 = vmatprep.subr.mxu0 0.0
      %1656 = vmatpush2.msra.mxu0 0.0
      %1657 = vmatprep.subr.mxu0 0.0
      %1658 = vmatpush2.msra.mxu0 0.0
      %1659 = vmatprep.subr.mxu0 0.0
      %1660 = vmatpush2.msra.mxu0 0.0
      %1661 = vmatprep.mubr.f32.mxu0 0.0
      %1662 = vmatmul.mubr.f32.gmra.mxu0 %v1563
      %v1663 = vpop.f32.mrf.mxu0
      %v1664 = vadd.f32 0.0, %v1663
      %v1665 = vpop.f32.mrf.mxu0
      %1666 = vmatprep.mubr.f32.mxu0 0.0
      %1667 = vmatmul.mubr.f32.gmra.mxu0 %v1565
      %v1668 = vpop.f32.mrf.mxu0
      %v1669 = vadd.f32 0.0, %v1668
      %v1670 = vpop.f32.mrf.mxu0
      %1671 = vmatprep.mubr.f32.mxu0 0.0
      %1672 = vmatmul.mubr.f32.gmra.mxu0 %v1567
      %v1673 = vpop.f32.mrf.mxu0
      %v1674 = vadd.f32 0.0, %v1673
      %v1675 = vpop.f32.mrf.mxu0
      %1676 = vmatprep.mubr.f32.mxu0 0.0
      %1677 = vmatmul.mubr.f32.gmra.mxu0 %v1569
      %v1678 = vpop.f32.mrf.mxu0
      %v1679 = vadd.f32 0.0, %v1678
      %v1680 = vpop.f32.mrf.mxu0
      %1681 = vmatprep.mubr.f32.mxu0 0.0
      %1682 = vmatmul.mubr.f32.gmra.mxu0 %v1571
      %v1683 = vpop.f32.mrf.mxu0
      %v1684 = vadd.f32 0.0, %v1683
      %v1685 = vpop.f32.mrf.mxu0
      %1686 = vmatprep.mubr.f32.mxu0 0.0
      %1687 = vmatmul.mubr.f32.gmra.mxu0 %v1573
      %v1688 = vpop.f32.mrf.mxu0
      %v1689 = vadd.f32 0.0, %v1688
      %v1690 = vpop.f32.mrf.mxu0
      %1691 = vmatprep.mubr.f32.mxu0 0.0
      %1692 = vmatmul.mubr.f32.gmra.mxu0 %v1575
      %v1693 = vpop.f32.mrf.mxu0
      %v1694 = vadd.f32 0.0, %v1693
      %v1695 = vpop.f32.mrf.mxu0
      %1696 = vmatprep.mubr.f32.mxu0 0.0
      %1697 = vmatmul.mubr.f32.gmra.mxu0 %v1577
      %v1698 = vpop.f32.mrf.mxu0
      %v1699 = vadd.f32 0.0, %v1698
      %v1700 = vpop.f32.mrf.mxu0
      %1701 = vmatprep.mubr.f32.mxu0 0.0
      %1702 = vmatmul.mubr.f32.gmra.mxu0 %v1579
      %v1703 = vpop.f32.mrf.mxu0
      %v1704 = vadd.f32 0.0, %v1703
      %v1705 = vpop.f32.mrf.mxu0
      %1706 = vmatprep.mubr.f32.mxu0 0.0
      %1707 = vmatmul.mubr.f32.gmra.mxu0 %v1581
      %v1708 = vpop.f32.mrf.mxu0
      %v1709 = vadd.f32 0.0, %v1708
      %v1710 = vpop.f32.mrf.mxu0
      %1711 = vmatprep.mubr.f32.mxu0 0.0
      %1712 = vmatmul.mubr.f32.gmra.mxu0 %v1583
      %v1713 = vpop.f32.mrf.mxu0
      %v1714 = vadd.f32 0.0, %v1713
      %v1715 = vpop.f32.mrf.mxu0
      %1716 = vmatprep.mubr.f32.mxu0 0.0
      %1717 = vmatmul.mubr.f32.gmra.mxu0 %v1585
      %v1718 = vpop.f32.mrf.mxu0
      %v1719 = vadd.f32 0.0, %v1718
      %v1720 = vpop.f32.mrf.mxu0
      %1721 = vmatprep.mubr.f32.mxu0 0.0
      %1722 = vmatmul.mubr.f32.gmra.mxu0 %v1587
      %v1723 = vpop.f32.mrf.mxu0
      %v1724 = vadd.f32 0.0, %v1723
      %v1725 = vpop.f32.mrf.mxu0
      %1726 = vmatprep.mubr.f32.mxu0 0.0
      %1727 = vmatmul.mubr.f32.gmra.mxu0 %v1589
      %v1728 = vpop.f32.mrf.mxu0
      %v1729 = vadd.f32 0.0, %v1728
      %v1730 = vpop.f32.mrf.mxu0
      %1731 = vmatprep.mubr.f32.mxu0 0.0
      %1732 = vmatmul.mubr.f32.gmra.mxu0 %v1591
      %v1733 = vpop.f32.mrf.mxu0
      %v1734 = vadd.f32 0.0, %v1733
      %v1735 = vpop.f32.mrf.mxu0
      %1736 = vmatprep.mubr.f32.mxu0 0.0
      %1737 = vmatmul.mubr.f32.gmra.mxu0 %v1593
      %v1738 = vpop.f32.mrf.mxu0
      %v1739 = vadd.f32 0.0, %v1738
      %v1740 = vpop.f32.mrf.mxu0
      %1741 = vdwg.mxu0
      %1758 = vrot.lane.b32.xlu0 %v1664, 7
      %v1759 = vpop.permute.xlu0 %1758
      %1760 = vrot.lane.b32.xlu0 %v1669, 7
      %v1761 = vpop.permute.xlu0 %1760
      %1762 = vrot.lane.b32.xlu0 %v1674, 7
      %v1763 = vpop.permute.xlu0 %1762
      %1764 = vrot.lane.b32.xlu0 %v1679, 7
      %v1765 = vpop.permute.xlu0 %1764
      %1766 = vrot.lane.b32.xlu0 %v1684, 7
      %v1767 = vpop.permute.xlu0 %1766
      %1768 = vrot.lane.b32.xlu0 %v1689, 7
      %v1769 = vpop.permute.xlu0 %1768
      %1770 = vrot.lane.b32.xlu0 %v1694, 7
      %v1771 = vpop.permute.xlu0 %1770
      %1772 = vrot.lane.b32.xlu0 %v1699, 7
      %v1773 = vpop.permute.xlu0 %1772
      %1774 = vrot.lane.b32.xlu0 %v1704, 7
      %v1775 = vpop.permute.xlu0 %1774
      %1776 = vrot.lane.b32.xlu0 %v1709, 7
      %v1777 = vpop.permute.xlu0 %1776
      %1778 = vrot.lane.b32.xlu0 %v1714, 7
      %v1779 = vpop.permute.xlu0 %1778
      %1780 = vrot.lane.b32.xlu0 %v1719, 7
      %v1781 = vpop.permute.xlu0 %1780
      %1782 = vrot.lane.b32.xlu0 %v1724, 7
      %v1783 = vpop.permute.xlu0 %1782
      %1784 = vrot.lane.b32.xlu0 %v1729, 7
      %v1785 = vpop.permute.xlu0 %1784
      %1786 = vrot.lane.b32.xlu0 %v1734, 7
      %v1787 = vpop.permute.xlu0 %1786
      %1788 = vrot.lane.b32.xlu0 %v1739, 7
      %v1789 = vpop.permute.xlu0 %1788
      %v1806 = vsub.f32 %v188, %v1759
      %v1807 = vsub.f32 %v189, %v1761
      %v1808 = vsub.f32 %v190, %v1763
      %v1809 = vsub.f32 %v191, %v1765
      %v1810 = vsub.f32 %v192, %v1767
      %v1811 = vsub.f32 %v193, %v1769
      %v1812 = vsub.f32 %v194, %v1771
      %v1813 = vsub.f32 %v195, %v1773
      %v1814 = vsub.f32 %v196, %v1775
      %v1815 = vsub.f32 %v197, %v1777
      %v1816 = vsub.f32 %v198, %v1779
      %v1817 = vsub.f32 %v199, %v1781
      %v1818 = vsub.f32 %v200, %v1783
      %v1819 = vsub.f32 %v201, %v1785
      %v1820 = vsub.f32 %v202, %v1787
      %v1821 = vsub.f32 %v203, %v1789
      %v1822 = vadd.f32 %v1664, 1.837877
      %v1823 = vadd.f32 %v1669, 1.837877
      %v1824 = vadd.f32 %v1674, 1.837877
      %v1825 = vadd.f32 %v1679, 1.837877
      %v1826 = vadd.f32 %v1684, 1.837877
      %v1827 = vadd.f32 %v1689, 1.837877
      %v1828 = vadd.f32 %v1694, 1.837877
      %v1829 = vadd.f32 %v1699, 1.837877
      %v1830 = vadd.f32 %v1704, 1.837877
      %v1831 = vadd.f32 %v1709, 1.837877
      %v1832 = vadd.f32 %v1714, 1.837877
      %v1833 = vadd.f32 %v1719, 1.837877
      %v1834 = vadd.f32 %v1724, 1.837877
      %v1835 = vadd.f32 %v1729, 1.837877
      %v1836 = vadd.f32 %v1734, 1.837877
      %v1837 = vadd.f32 %v1739, 1.837877
      %v1838 = vmul.f32 %v1806, %v1806
      %v1839 = vmul.f32 %v1807, %v1807
      %v1840 = vmul.f32 %v1808, %v1808
      %v1841 = vmul.f32 %v1809, %v1809
      %v1842 = vmul.f32 %v1810, %v1810
      %v1843 = vmul.f32 %v1811, %v1811
      %v1844 = vmul.f32 %v1812, %v1812
      %v1845 = vmul.f32 %v1813, %v1813
      %v1846 = vmul.f32 %v1814, %v1814
      %v1847 = vmul.f32 %v1815, %v1815
      %v1848 = vmul.f32 %v1816, %v1816
      %v1849 = vmul.f32 %v1817, %v1817
      %v1850 = vmul.f32 %v1818, %v1818
      %v1851 = vmul.f32 %v1819, %v1819
      %v1852 = vmul.f32 %v1820, %v1820
      %v1853 = vmul.f32 %v1821, %v1821
      %v1854 = vsub.f32 0.0, %v1664
      %v1855 = vsub.f32 0.0, %v1669
      %v1856 = vsub.f32 0.0, %v1674
      %v1857 = vsub.f32 0.0, %v1679
      %v1858 = vsub.f32 0.0, %v1684
      %v1859 = vsub.f32 0.0, %v1689
      %v1860 = vsub.f32 0.0, %v1694
      %v1861 = vsub.f32 0.0, %v1699
      %v1862 = vsub.f32 0.0, %v1704
      %v1863 = vsub.f32 0.0, %v1709
      %v1864 = vsub.f32 0.0, %v1714
      %v1865 = vsub.f32 0.0, %v1719
      %v1866 = vsub.f32 0.0, %v1724
      %v1867 = vsub.f32 0.0, %v1729
      %v1868 = vsub.f32 0.0, %v1734
      %v1869 = vsub.f32 0.0, %v1739
      %v1870 = vmul.f32 %v1854, 1.442695
      %v1871 = vpow.pop %v1870
      %v1872 = vmul.f32 %v1855, 1.442695
      %v1873 = vpow.pop %v1872
      %v1874 = vmul.f32 %v1856, 1.442695
      %v1875 = vpow.pop %v1874
      %v1876 = vmul.f32 %v1857, 1.442695
      %v1877 = vpow.pop %v1876
      %v1878 = vmul.f32 %v1858, 1.442695
      %v1879 = vpow.pop %v1878
      %v1880 = vmul.f32 %v1859, 1.442695
      %v1881 = vpow.pop %v1880
      %v1882 = vmul.f32 %v1860, 1.442695
      %v1883 = vpow.pop %v1882
      %v1884 = vmul.f32 %v1861, 1.442695
      %v1885 = vpow.pop %v1884
      %v1886 = vmul.f32 %v1862, 1.442695
      %v1887 = vpow.pop %v1886
      %v1888 = vmul.f32 %v1863, 1.442695
      %v1889 = vpow.pop %v1888
      %v1890 = vmul.f32 %v1864, 1.442695
      %v1891 = vpow.pop %v1890
      %v1892 = vmul.f32 %v1865, 1.442695
      %v1893 = vpow.pop %v1892
      %v1894 = vmul.f32 %v1866, 1.442695
      %v1895 = vpow.pop %v1894
      %v1896 = vmul.f32 %v1867, 1.442695
      %v1897 = vpow.pop %v1896
      %v1898 = vmul.f32 %v1868, 1.442695
      %v1899 = vpow.pop %v1898
      %v1900 = vmul.f32 %v1869, 1.442695
      %v1901 = vpow.pop %v1900
      %1918 = vrot.lane.b32.xlu0 %v1871, 4
      %v1919 = vpop.permute.xlu0 %1918
      %1920 = vrot.lane.b32.xlu0 %v1873, 4
      %v1921 = vpop.permute.xlu0 %1920
      %1922 = vrot.lane.b32.xlu0 %v1875, 4
      %v1923 = vpop.permute.xlu0 %1922
      %1924 = vrot.lane.b32.xlu0 %v1877, 4
      %v1925 = vpop.permute.xlu0 %1924
      %1926 = vrot.lane.b32.xlu0 %v1879, 4
      %v1927 = vpop.permute.xlu0 %1926
      %1928 = vrot.lane.b32.xlu0 %v1881, 4
      %v1929 = vpop.permute.xlu0 %1928
      %1930 = vrot.lane.b32.xlu0 %v1883, 4
      %v1931 = vpop.permute.xlu0 %1930
      %1932 = vrot.lane.b32.xlu0 %v1885, 4
      %v1933 = vpop.permute.xlu0 %1932
      %1934 = vrot.lane.b32.xlu0 %v1887, 4
      %v1935 = vpop.permute.xlu0 %1934
      %1936 = vrot.lane.b32.xlu0 %v1889, 4
      %v1937 = vpop.permute.xlu0 %1936
      %1938 = vrot.lane.b32.xlu0 %v1891, 4
      %v1939 = vpop.permute.xlu0 %1938
      %1940 = vrot.lane.b32.xlu0 %v1893, 4
      %v1941 = vpop.permute.xlu0 %1940
      %1942 = vrot.lane.b32.xlu0 %v1895, 4
      %v1943 = vpop.permute.xlu0 %1942
      %1944 = vrot.lane.b32.xlu0 %v1897, 4
      %v1945 = vpop.permute.xlu0 %1944
      %1946 = vrot.lane.b32.xlu0 %v1899, 4
      %v1947 = vpop.permute.xlu0 %1946
      %1948 = vrot.lane.b32.xlu0 %v1901, 4
      %v1949 = vpop.permute.xlu0 %1948
      %v1966 = vmul.f32 %v1838, %v1919
      %v1967 = vmul.f32 %v1839, %v1921
      %v1968 = vmul.f32 %v1840, %v1923
      %v1969 = vmul.f32 %v1841, %v1925
      %v1970 = vmul.f32 %v1842, %v1927
      %v1971 = vmul.f32 %v1843, %v1929
      %v1972 = vmul.f32 %v1844, %v1931
      %v1973 = vmul.f32 %v1845, %v1933
      %v1974 = vmul.f32 %v1846, %v1935
      %v1975 = vmul.f32 %v1847, %v1937
      %v1976 = vmul.f32 %v1848, %v1939
      %v1977 = vmul.f32 %v1849, %v1941
      %v1978 = vmul.f32 %v1850, %v1943
      %v1979 = vmul.f32 %v1851, %v1945
      %v1980 = vmul.f32 %v1852, %v1947
      %v1981 = vmul.f32 %v1853, %v1949
      %1998 = vrot.lane.b32.xlu0 %v1966, 124
      %v1999 = vpop.permute.xlu0 %1998
      %2000 = vrot.lane.b32.xlu0 %v1967, 124
      %v2001 = vpop.permute.xlu0 %2000
      %2002 = vrot.lane.b32.xlu0 %v1968, 124
      %v2003 = vpop.permute.xlu0 %2002
      %2004 = vrot.lane.b32.xlu0 %v1969, 124
      %v2005 = vpop.permute.xlu0 %2004
      %2006 = vrot.lane.b32.xlu0 %v1970, 124
      %v2007 = vpop.permute.xlu0 %2006
      %2008 = vrot.lane.b32.xlu0 %v1971, 124
      %v2009 = vpop.permute.xlu0 %2008
      %2010 = vrot.lane.b32.xlu0 %v1972, 124
      %v2011 = vpop.permute.xlu0 %2010
      %2012 = vrot.lane.b32.xlu0 %v1973, 124
      %v2013 = vpop.permute.xlu0 %2012
      %2014 = vrot.lane.b32.xlu0 %v1974, 124
      %v2015 = vpop.permute.xlu0 %2014
      %2016 = vrot.lane.b32.xlu0 %v1975, 124
      %v2017 = vpop.permute.xlu0 %2016
      %2018 = vrot.lane.b32.xlu0 %v1976, 124
      %v2019 = vpop.permute.xlu0 %2018
      %2020 = vrot.lane.b32.xlu0 %v1977, 124
      %v2021 = vpop.permute.xlu0 %2020
      %2022 = vrot.lane.b32.xlu0 %v1978, 124
      %v2023 = vpop.permute.xlu0 %2022
      %2024 = vrot.lane.b32.xlu0 %v1979, 124
      %v2025 = vpop.permute.xlu0 %2024
      %2026 = vrot.lane.b32.xlu0 %v1980, 124
      %v2027 = vpop.permute.xlu0 %2026
      %2028 = vrot.lane.b32.xlu0 %v1981, 124
      %v2029 = vpop.permute.xlu0 %2028
      %v2046 = vadd.f32 %v1822, %v1999
      %v2047 = vadd.f32 %v1823, %v2001
      %v2048 = vadd.f32 %v1824, %v2003
      %v2049 = vadd.f32 %v1825, %v2005
      %v2050 = vadd.f32 %v1826, %v2007
      %v2051 = vadd.f32 %v1827, %v2009
      %v2052 = vadd.f32 %v1828, %v2011
      %v2053 = vadd.f32 %v1829, %v2013
      %v2054 = vadd.f32 %v1830, %v2015
      %v2055 = vadd.f32 %v1831, %v2017
      %v2056 = vadd.f32 %v1832, %v2019
      %v2057 = vadd.f32 %v1833, %v2021
      %v2058 = vadd.f32 %v1834, %v2023
      %v2059 = vadd.f32 %v1835, %v2025
      %v2060 = vadd.f32 %v1836, %v2027
      %v2061 = vadd.f32 %v1837, %v2029
      %v2062 = vmul.f32 %v2046, -0.5
      %v2063 = vmul.f32 %v2047, -0.5
      %v2064 = vmul.f32 %v2048, -0.5
      %v2065 = vmul.f32 %v2049, -0.5
      %v2066 = vmul.f32 %v2050, -0.5
      %v2067 = vmul.f32 %v2051, -0.5
      %v2068 = vmul.f32 %v2052, -0.5
      %v2069 = vmul.f32 %v2053, -0.5
      %v2070 = vmul.f32 %v2054, -0.5
      %v2071 = vmul.f32 %v2055, -0.5
      %v2072 = vmul.f32 %v2056, -0.5
      %v2073 = vmul.f32 %v2057, -0.5
      %v2074 = vmul.f32 %v2058, -0.5
      %v2075 = vmul.f32 %v2059, -0.5
      %v2076 = vmul.f32 %v2060, -0.5
      %v2077 = vmul.f32 %v2061, -0.5
      %vm2078 = vcmask 48152
      %v2079 = vsel %vm2078, %v2062, 0.0
      %v2080 = vsel %vm2078, %v2063, 0.0
      %v2081 = vadd.f32 %v2079, %v2080
      %v2082 = vsel %vm2078, %v2064, 0.0
      %v2083 = vadd.f32 %v2081, %v2082
      %v2084 = vsel %vm2078, %v2065, 0.0
      %v2085 = vadd.f32 %v2083, %v2084
      %v2086 = vsel %vm2078, %v2066, 0.0
      %v2087 = vadd.f32 %v2085, %v2086
      %v2088 = vsel %vm2078, %v2067, 0.0
      %v2089 = vadd.f32 %v2087, %v2088
      %v2090 = vsel %vm2078, %v2068, 0.0
      %v2091 = vadd.f32 %v2089, %v2090
      %v2092 = vsel %vm2078, %v2069, 0.0
      %v2093 = vadd.f32 %v2091, %v2092
      %v2094 = vsel %vm2078, %v2070, 0.0
      %v2095 = vadd.f32 %v2093, %v2094
      %v2096 = vsel %vm2078, %v2071, 0.0
      %v2097 = vadd.f32 %v2095, %v2096
      %v2098 = vsel %vm2078, %v2072, 0.0
      %v2099 = vadd.f32 %v2097, %v2098
      %v2100 = vsel %vm2078, %v2073, 0.0
      %v2101 = vadd.f32 %v2099, %v2100
      %v2102 = vsel %vm2078, %v2074, 0.0
      %v2103 = vadd.f32 %v2101, %v2102
      %v2104 = vsel %vm2078, %v2075, 0.0
      %v2105 = vadd.f32 %v2103, %v2104
      %v2106 = vsel %vm2078, %v2076, 0.0
      %v2107 = vadd.f32 %v2105, %v2106
      %v2108 = vsel %vm2078, %v2077, 0.0
      %v2109 = vadd.f32 %v2107, %v2108
      %v2110 = vrot.slane %v2109, 4
      %v2111 = vadd.f32 %v2109, %v2110
      %v2112 = vrot.slane %v2111, 2
      %v2113 = vadd.f32 %v2111, %v2112
      %v2114 = vrot.slane %v2113, 1
      %v2115 = vadd.f32 %v2113, %v2114
      %2117 = vrot.lane.b32.xlu0 %v2115, 125
      %v2118 = vpop.permute.xlu0 %2117
      %vm2120 = vcmask 23552
      %v2121 = vsel %vm2120, %v2118, 0.0
      %2122 = vadd.xlane.f32.xlu0 %v2121
      %v2123 = vpop.xlane.xlu0 %2122
      %v2124 = vmul.f32 %v1527, 1.442695
      %v2125 = vpow.pop %v2124
      %v2126 = vlaneseq
      %v2127 = vshrl.u32 %v2126, 7
      %v2128 = vsub.s32 0, %v2127
      %v2129 = vrot.slane %v2125, %v2128
      %2131 = vrot.lane.b32.xlu0 %v2129, 7
      %v2132 = vpop.permute.xlu0 %2131
      %v2134 = vmul.f32 %v188, %v2132
      %v2135 = vmul.f32 %v189, %v2132
      %v2136 = vmul.f32 %v190, %v2132
      %v2137 = vmul.f32 %v191, %v2132
      %v2138 = vmul.f32 %v192, %v2132
      %v2139 = vmul.f32 %v193, %v2132
      %v2140 = vmul.f32 %v194, %v2132
      %v2141 = vmul.f32 %v195, %v2132
      %v2142 = vmul.f32 %v196, %v2132
      %v2143 = vmul.f32 %v197, %v2132
      %v2144 = vmul.f32 %v198, %v2132
      %v2145 = vmul.f32 %v199, %v2132
      %v2146 = vmul.f32 %v200, %v2132
      %v2147 = vmul.f32 %v201, %v2132
      %v2148 = vmul.f32 %v202, %v2132
      %v2149 = vmul.f32 %v203, %v2132
      %v2150 = vlaneseq
      %v2151 = vshrl.u32 %v2150, 7
      %v2152 = vsub.s32 0, %v2151
      %v2153 = vrot.slane %v1527, %v2152
      %2155 = vrot.lane.b32.xlu0 %v2153, 4
      %v2156 = vpop.permute.xlu0 %2155
      %v2158 = vadd.f32 %v2134, %v2156
      %v2159 = vadd.f32 %v2135, %v2156
      %v2160 = vadd.f32 %v2136, %v2156
      %v2161 = vadd.f32 %v2137, %v2156
      %v2162 = vadd.f32 %v2138, %v2156
      %v2163 = vadd.f32 %v2139, %v2156
      %v2164 = vadd.f32 %v2140, %v2156
      %v2165 = vadd.f32 %v2141, %v2156
      %v2166 = vadd.f32 %v2142, %v2156
      %v2167 = vadd.f32 %v2143, %v2156
      %v2168 = vadd.f32 %v2144, %v2156
      %v2169 = vadd.f32 %v2145, %v2156
      %v2170 = vadd.f32 %v2146, %v2156
      %v2171 = vadd.f32 %v2147, %v2156
      %v2172 = vadd.f32 %v2148, %v2156
      %v2173 = vadd.f32 %v2149, %v2156
      %v2174 = vmul.f32 %v2158, 0.5
      %v2175 = vmul.f32 %v2159, 0.5
      %v2176 = vmul.f32 %v2160, 0.5
      %v2177 = vmul.f32 %v2161, 0.5
      %v2178 = vmul.f32 %v2162, 0.5
      %v2179 = vmul.f32 %v2163, 0.5
      %v2180 = vmul.f32 %v2164, 0.5
      %v2181 = vmul.f32 %v2165, 0.5
      %v2182 = vmul.f32 %v2166, 0.5
      %v2183 = vmul.f32 %v2167, 0.5
      %v2184 = vmul.f32 %v2168, 0.5
      %v2185 = vmul.f32 %v2169, 0.5
      %v2186 = vmul.f32 %v2170, 0.5
      %v2187 = vmul.f32 %v2171, 0.5
      %v2188 = vmul.f32 %v2172, 0.5
      %v2189 = vmul.f32 %v2173, 0.5
      %v2190 = vmul.f32 %v2174, %v2158
      %v2191 = vmul.f32 %v2175, %v2159
      %v2192 = vmul.f32 %v2176, %v2160
      %v2193 = vmul.f32 %v2177, %v2161
      %v2194 = vmul.f32 %v2178, %v2162
      %v2195 = vmul.f32 %v2179, %v2163
      %v2196 = vmul.f32 %v2180, %v2164
      %v2197 = vmul.f32 %v2181, %v2165
      %v2198 = vmul.f32 %v2182, %v2166
      %v2199 = vmul.f32 %v2183, %v2167
      %v2200 = vmul.f32 %v2184, %v2168
      %v2201 = vmul.f32 %v2185, %v2169
      %v2202 = vmul.f32 %v2186, %v2170
      %v2203 = vmul.f32 %v2187, %v2171
      %v2204 = vmul.f32 %v2188, %v2172
      %v2205 = vmul.f32 %v2189, %v2173
      %v2206 = vsub.f32 -0.9189385, %v2190
      %v2207 = vsub.f32 -0.9189385, %v2191
      %v2208 = vsub.f32 -0.9189385, %v2192
      %v2209 = vsub.f32 -0.9189385, %v2193
      %v2210 = vsub.f32 -0.9189385, %v2194
      %v2211 = vsub.f32 -0.9189385, %v2195
      %v2212 = vsub.f32 -0.9189385, %v2196
      %v2213 = vsub.f32 -0.9189385, %v2197
      %v2214 = vsub.f32 -0.9189385, %v2198
      %v2215 = vsub.f32 -0.9189385, %v2199
      %v2216 = vsub.f32 -0.9189385, %v2200
      %v2217 = vsub.f32 -0.9189385, %v2201
      %v2218 = vsub.f32 -0.9189385, %v2202
      %v2219 = vsub.f32 -0.9189385, %v2203
      %v2220 = vsub.f32 -0.9189385, %v2204
      %v2221 = vsub.f32 -0.9189385, %v2205
      %vm2222 = vcmask 80952
      %v2223 = vsel %vm2222, %v2206, 0.0
      %v2224 = vsel %vm2222, %v2207, 0.0
      %v2225 = vadd.f32 %v2223, %v2224
      %v2226 = vsel %vm2222, %v2208, 0.0
      %v2227 = vadd.f32 %v2225, %v2226
      %v2228 = vsel %vm2222, %v2209, 0.0
      %v2229 = vadd.f32 %v2227, %v2228
      %v2230 = vsel %vm2222, %v2210, 0.0
      %v2231 = vadd.f32 %v2229, %v2230
      %v2232 = vsel %vm2222, %v2211, 0.0
      %v2233 = vadd.f32 %v2231, %v2232
      %v2234 = vsel %vm2222, %v2212, 0.0
      %v2235 = vadd.f32 %v2233, %v2234
      %v2236 = vsel %vm2222, %v2213, 0.0
      %v2237 = vadd.f32 %v2235, %v2236
      %v2238 = vsel %vm2222, %v2214, 0.0
      %v2239 = vadd.f32 %v2237, %v2238
      %v2240 = vsel %vm2222, %v2215, 0.0
      %v2241 = vadd.f32 %v2239, %v2240
      %v2242 = vsel %vm2222, %v2216, 0.0
      %v2243 = vadd.f32 %v2241, %v2242
      %v2244 = vsel %vm2222, %v2217, 0.0
      %v2245 = vadd.f32 %v2243, %v2244
      %v2246 = vsel %vm2222, %v2218, 0.0
      %v2247 = vadd.f32 %v2245, %v2246
      %v2248 = vsel %vm2222, %v2219, 0.0
      %v2249 = vadd.f32 %v2247, %v2248
      %v2250 = vsel %vm2222, %v2220, 0.0
      %v2251 = vadd.f32 %v2249, %v2250
      %v2252 = vsel %vm2222, %v2221, 0.0
      %v2253 = vadd.f32 %v2251, %v2252
      %v2254 = vrot.slane %v2253, 4
      %v2255 = vadd.f32 %v2253, %v2254
      %v2256 = vrot.slane %v2255, 2
      %v2257 = vadd.f32 %v2255, %v2256
      %v2258 = vrot.slane %v2257, 1
      %v2259 = vadd.f32 %v2257, %v2258
      %2261 = vrot.lane.b32.xlu0 %v2259, 121
      %v2262 = vpop.permute.xlu0 %2261
      %v2264 = vsel %vm2120, %v2262, 0.0
      %2265 = vadd.xlane.f32.xlu0 %v2264
      %v2266 = vpop.xlane.xlu0 %2265
      %vm2267 = vcmask 16384
      %v2268 = vsel %vm2267, %v1527, 0.0
      %2269 = vadd.xlane.f32.xlu0 %v2268
      %v2270 = vpop.xlane.xlu0 %2269
      %v2271 = vmul.f32 %v2270, -128.0
      %2273 = vrot.lane.b32.xlu0 %v1336, 123
      %v2274 = vpop.permute.xlu0 %2273
      %vm2276 = vcmask 7168
      %v2277 = vsel %vm2276, %v2123, %v2266
      %vm2278 = vcmask 15360
      %v2279 = vsel %vm2278, %v2277, %v2271
      %v2280 = vsel %vm2120, %v2279, %v2274
      %v2281 = vsel %vm1562, %v2280, %v1310
      %vm2282 = vcmask 39936
      %v2283 = vsel %vm2282, %v2281, 0.0
      %v2284 = vsel %vm1112, %v2283, 0.0
      %2285 = vst [vmem:[%s187] sm:$0xff] %v2284
      %p2286 = scmp.lt.s32.totalorder %s14, 1
      %s2287 = scalar_select %p2286, %s14, 1
      %s2288 = smul.addr %s2287, 8
      %s2289 = scalar_lea.vmem %s3, %s2288
      // Predicated region
      $region33: #{pointflow_forward.1} parent=31 // pred_check
        %p2290 = pneg %p105
      $region34: #{pointflow_forward.1} parent=31 // pred_check_branch
        %2292 = sbr.rel (%p2290) target = $region36
      $region35: #{pointflow_forward.1} parent=31 // pred_region
        _
      $region36: #{pointflow_forward.1} parent=31 // pred_fallthru
        _
    $region32: #{pointflow_forward.1} parent=5 // pred_fallthru
      _
    %p2293 = scmp.le.s32.totalorder 2, %s9
    // Predicated region
    $region37: #{pointflow_forward.1} parent=5 // pred_check
      %p2294 = pneg %p2293
    $region38: #{pointflow_forward.1} parent=5 // pred_check_branch
      %2296 = sbr.rel (%p2294) target = $region40
    $region39: #{pointflow_forward.1} parent=5 // pred_region
      %s2297 = ssub.s32 %s9, 2
      // Predicated region
      $region41: #{pointflow_forward.1} parent=39 // pred_check
        %p2298 = pneg %p111
      $region42: #{pointflow_forward.1} parent=39 // pred_check_branch
        %2300 = sbr.rel (%p2298) target = $region44
      $region43: #{pointflow_forward.1} parent=39 // pred_region
        %p2301 = scmp.lt.s32.totalorder %s15, 1
        %s2302 = scalar_select %p2301, %s15, 1
        %s2303 = smul.addr %s2302, 8
        %s2304 = scalar_lea.vmem %s3, %s2303
      $region44: #{pointflow_forward.1} parent=39 // pred_fallthru
        _
    $region40: #{pointflow_forward.1} parent=5 // pred_fallthru
      _
  $region6: #{pointflow_forward.1} parent=0 // loop_footer
    %s13 = sadd.s32 1, %s9
  $region7: #{pointflow_forward.1} parent=0 // loop_footer_branch
    %8 = sbr.rel target = $region3
  $region8: #{pointflow_forward.1} parent=0 // loop_exit
    _

</llo_original>
